<compile_context>
chip_gen: v6e
topology: v6e:2x2x1
jax: 0.10.0
libtpu: 0.0.40
codegen_flags: <defaults>
</compile_context>

<pallas_src>
import functools

import jax
import jax.numpy as jnp
from jax.experimental import pallas as pl
from jax.experimental.pallas import tpu as pltpu


def _mlp_kernel(x_ref, w0_ref, w1_ref, w2_ref, pk_ref, o_ref, *, d0, d1, d2):
    # x_ref: (bn, d_in) f32 natural layout.  w*: PyTorch (out, in) layout, bf16.
    # pk_ref: packed [b0 | b1 | b2 | w3 | b3] f32 column.
    x = x_ref[...].astype(jnp.bfloat16)

    o1, o2, o3, o4 = d0, d0 + d1, d0 + d1 + d2, d0 + d1 + 2 * d2
    b0 = pk_ref[0:o1]          # (d0, 1)
    b1 = pk_ref[o1:o2]         # (d1, 1)
    b2 = pk_ref[o2:o3]         # (d2, 1)
    w3 = pk_ref[o3:o4]         # (d2, 1)
    b3 = pk_ref[o4:o4 + 1]     # (1, 1)

    # Layer 0: contract the shared d_in axis of W0 (d0, d_in) and x (bn, d_in)
    # -> (d0, bn).  Batch lands on lanes without ever materializing x^T.
    h = jax.lax.dot_general(w0_ref[...], x, (((1,), (1,)), ((), ())),
                            preferred_element_type=jnp.float32)
    h = jnp.maximum(h + b0, 0.0)

    h = jnp.dot(w1_ref[...], h.astype(jnp.bfloat16),
                preferred_element_type=jnp.float32)
    h = jnp.maximum(h + b1, 0.0)

    h = jnp.dot(w2_ref[...], h.astype(jnp.bfloat16),
                preferred_element_type=jnp.float32)
    h = jnp.maximum(h + b2, 0.0)                       # (d2, bn) f32

    # Layer 3 (d2 -> 1): VPU multiply + cross-sublane reduce instead of a
    # 1-lane MXU matmul; result is a lane-dense (1, bn) row.
    y = jnp.sum(h * w3, axis=0, keepdims=True) + b3
    o_ref[...] = y.astype(o_ref.dtype)


def _round_up(x, m):
    return ((x + m - 1) // m) * m


def _pick_block_n(n, block_n):
    n_pad = _round_up(n, 128)
    if block_n is not None:
        # Round user-supplied tile to a multiple of 128 lanes for legal tiling.
        return max(128, (min(block_n, n_pad) // 128) * 128)
    try:
        kind = jax.devices()[0].device_kind.lower()
    except Exception:  # pragma: no cover - conservative fallback
        kind = ""
    num_tc = 2 if "v7" in kind else 1   # v7x: 2 TensorCores/chip; v5e/v6e: 1
    # Single step on single-TC chips (per-step overhead dominates this kernel);
    # an even split on v7x so dimension_semantics=("parallel",) uses both TCs.
    return min(_round_up(pl.cdiv(n_pad, num_tc), 128), 4096)


@functools.partial(jax.jit, static_argnames=("bn",))
def _mlp_forward_impl(scores, params, bn):
    n, d_in = scores.shape
    w0, w1, w2, packed = params["w0"], params["w1"], params["w2"], params["packed"]
    d0, d1, d2 = w0.shape[0], w1.shape[0], w2.shape[0]
    pk = packed.shape[0]

    grid = (pl.cdiv(n, bn),)

    def resident(shape):
        # Small weights/biases: one full block, resident in VMEM across the grid.
        # Constant index_map + single buffer (double-buffering them is wasted VMEM).
        return pl.BlockSpec(shape, lambda i: (0, 0), pipeline_mode=pl.Buffered(1))

    flops = 2 * n * (d_in * d0 + d0 * d1 + d1 * d2 + d2)
    bytes_accessed = (scores.size * scores.dtype.itemsize + n * 4
                      + sum(a.size * a.dtype.itemsize for a in (w0, w1, w2, packed)))

    out = pl.pallas_call(
        functools.partial(_mlp_kernel, d0=d0, d1=d1, d2=d2),
        out_shape=jax.ShapeDtypeStruct((1, n), jnp.float32),
        grid_spec=pltpu.PrefetchScalarGridSpec(
            num_scalar_prefetch=0,
            grid=grid,
            in_specs=[
                pl.BlockSpec((bn, d_in), lambda i: (i, 0)),   # contiguous x rows
                resident((d0, d_in)),
                resident((d1, d0)),
                resident((d2, d1)),
                resident((pk, 1)),
            ],
            out_specs=pl.BlockSpec((1, bn), lambda i: (0, i)),
        ),
        compiler_params=pltpu.CompilerParams(
            dimension_semantics=("parallel",)),
        cost_estimate=pl.CostEstimate(
            flops=flops, transcendentals=0, bytes_accessed=bytes_accessed),
    )(scores, w0, w1, w2, packed)

    # (N, 1) like the PyTorch module.  (1, N) -> (N, 1) is an order-preserving
    # reshape; drop it if the consumer accepts the lane-dense (1, N) row.
    return out.reshape(n, 1)


def mlp_forward(scores, params, block_n=None):
    """scores: (N, 4*nhid) f32 (natural layout). params: prepare_params() output."""
    bn = _pick_block_n(scores.shape[0], block_n)
    return _mlp_forward_impl(scores, params, bn)


def prepare_params(raw):
    """One-time cast + packing of PyTorch-layout params (hoisted out of forward)."""
    packed = jnp.concatenate([
        raw["b0"].reshape(-1), raw["b1"].reshape(-1), raw["b2"].reshape(-1),
        raw["w3"].reshape(-1), raw["b3"].reshape(-1)]).astype(jnp.float32)
    pad = (-packed.shape[0]) % 8
    if pad:
        packed = jnp.pad(packed, (0, pad))
    return {
        "w0": raw["w0"].astype(jnp.bfloat16),
        "w1": raw["w1"].astype(jnp.bfloat16),
        "w2": raw["w2"].astype(jnp.bfloat16),
        "packed": packed.reshape(-1, 1),
    }


def xavier_uniform(key, fan_out, fan_in):
    # nn.init.xavier_uniform_ (gain=1): U(-a, a), a = sqrt(6/(fan_in+fan_out)).
    # PyTorch Linear.weight layout is (out, in); kept as-is.
    a = (6.0 / (fan_in + fan_out)) ** 0.5
    return jax.random.uniform(key, (fan_out, fan_in), jnp.float32, -a, a)


def init_params(key, nhid):
    d_in, d0, d1, d2 = 4 * nhid, 2 * nhid, nhid, nhid // 2
    k0, k1, k2, k3, kb1, kb2, kb3 = jax.random.split(key, 7)

    def default_bias(k, fan_in, dim):
        # PyTorch default Linear bias init: U(-1/sqrt(fan_in), 1/sqrt(fan_in)).
        bound = 1.0 / (fan_in ** 0.5)
        return jax.random.uniform(k, (dim,), jnp.float32, -bound, bound)

    return {
        "w0": xavier_uniform(k0, d0, d_in), "b0": jnp.zeros((d0,), jnp.float32),
        "w1": xavier_uniform(k1, d1, d0),   "b1": default_bias(kb1, d0, d1),
        "w2": xavier_uniform(k2, d2, d1),   "b2": default_bias(kb2, d1, d2),
        "w3": xavier_uniform(k3, 1, d2),    "b3": default_bias(kb3, d2, 1),
    }


def reference_forward(scores, p):
    """Pure-JAX reference mirroring the kernel numerics (bf16 MXU in, f32 acc)."""
    bf = jnp.bfloat16
    h = jnp.dot(scores.astype(bf), p["w0"].T.astype(bf),
                preferred_element_type=jnp.float32) + p["b0"]
    h = jnp.maximum(h, 0.0)
    h = jnp.dot(h.astype(bf), p["w1"].T.astype(bf),
                preferred_element_type=jnp.float32) + p["b1"]
    h = jnp.maximum(h, 0.0)
    h = jnp.dot(h.astype(bf), p["w2"].T.astype(bf),
                preferred_element_type=jnp.float32) + p["b2"]
    h = jnp.maximum(h, 0.0)
    return h @ p["w3"].T + p["b3"]                    # (N, 1), last layer in f32


if __name__ == "__main__":
    nhid = 32            # input dim = 4*nhid = 128
    n = 1024             # splits into 2 even tiles on v7x; 1 tile on v5e/v6e

    key = jax.random.PRNGKey(0)
    kx, kp = jax.random.split(key)
    scores = jax.random.normal(kx, (n, 4 * nhid), jnp.float32)
    raw = init_params(kp, nhid)
    params = prepare_params(raw)      # one-time cast/pack, hoisted out of forward

    out = mlp_forward(scores, params)
    out = jax.block_until_ready(out)

    ref = reference_forward(scores, raw)
    assert out.shape == (n, 1), out.shape
    max_err = float(jnp.max(jnp.abs(out - ref)))
    assert jnp.allclose(out, ref, atol=2e-2, rtol=2e-2), max_err

    print("KERNEL_OK")
</pallas_src>

<mosaic_0001>
module attributes {stable_mosaic.version = 11 : i64} {
  func.func @_mlp_kernel(%arg0: i32, %arg1: memref<1024x128xf32, #tpu.memory_space<vmem>>, %arg2: memref<64x128xbf16, #tpu.memory_space<vmem>>, %arg3: memref<32x64xbf16, #tpu.memory_space<vmem>>, %arg4: memref<16x32xbf16, #tpu.memory_space<vmem>>, %arg5: memref<136x1xf32, #tpu.memory_space<vmem>>, %arg6: memref<1x1024xf32, #tpu.memory_space<vmem>>) attributes {dimension_semantics = [#tpu.dimension_semantics<parallel>], iteration_bounds = array<i64: 1>, scalar_prefetch = 0 : i64, scratch_operands = 0 : i64, tpu.core_type = #tpu.core_type<tc>, window_params = [{transform_indices = @transform_0, window_bounds = array<i64: 1024, 128>}, {pipeline_mode = #tpu.pipeline_mode<synchronous>, transform_indices = @transform_1, window_bounds = array<i64: 64, 128>}, {pipeline_mode = #tpu.pipeline_mode<synchronous>, transform_indices = @transform_2, window_bounds = array<i64: 32, 64>}, {pipeline_mode = #tpu.pipeline_mode<synchronous>, transform_indices = @transform_3, window_bounds = array<i64: 16, 32>}, {pipeline_mode = #tpu.pipeline_mode<synchronous>, transform_indices = @transform_4, window_bounds = array<i64: 136, 1>}, {transform_indices = @transform_5, window_bounds = array<i64: 1, 1024>}]} {
    %c0 = arith.constant 0 : index
    %c0_0 = arith.constant 0 : index
    %0 = vector.load %arg1[%c0, %c0_0] : memref<1024x128xf32, #tpu.memory_space<vmem>>, vector<1024x128xf32>
    %1 = arith.truncf %0 : vector<1024x128xf32> to vector<1024x128xbf16>
    %c0_1 = arith.constant 0 : index
    %c0_2 = arith.constant 0 : index
    %2 = vector.load %arg5[%c0_1, %c0_2] : memref<136x1xf32, #tpu.memory_space<vmem>>, vector<64x1xf32>
    %c64 = arith.constant 64 : index
    %c0_3 = arith.constant 0 : index
    %3 = vector.load %arg5[%c64, %c0_3] : memref<136x1xf32, #tpu.memory_space<vmem>>, vector<32x1xf32>
    %c96 = arith.constant 96 : index
    %c0_4 = arith.constant 0 : index
    %4 = vector.load %arg5[%c96, %c0_4] : memref<136x1xf32, #tpu.memory_space<vmem>>, vector<16x1xf32>
    %c112 = arith.constant 112 : index
    %c0_5 = arith.constant 0 : index
    %5 = vector.load %arg5[%c112, %c0_5] : memref<136x1xf32, #tpu.memory_space<vmem>>, vector<16x1xf32>
    %c128 = arith.constant 128 : index
    %c0_6 = arith.constant 0 : index
    %6 = vector.load %arg5[%c128, %c0_6] : memref<136x1xf32, #tpu.memory_space<vmem>>, vector<1x1xf32>
    %c0_7 = arith.constant 0 : index
    %c0_8 = arith.constant 0 : index
    %7 = vector.load %arg2[%c0_7, %c0_8] : memref<64x128xbf16, #tpu.memory_space<vmem>>, vector<64x128xbf16>
    %cst = arith.constant dense<0.000000e+00> : vector<64x1024xf32>
    %8 = tpu.matmul %7, %1, %cst {dimension_numbers = #tpu.dot_dimension_numbers<[1], [1], [0], [0], [0, 0, 1, 0], [], []>} : vector<64x128xbf16>, vector<1024x128xbf16>, vector<64x1024xf32> -> vector<64x1024xf32>
    %9 = vector.broadcast %2 : vector<64x1xf32> to vector<64x1024xf32>
    %10 = arith.addf %8, %9 : vector<64x1024xf32>
    %cst_9 = arith.constant 0.000000e+00 : f32
    %11 = vector.broadcast %cst_9 : f32 to vector<64x1024xf32>
    %12 = arith.maximumf %10, %11 : vector<64x1024xf32>
    %c0_10 = arith.constant 0 : index
    %c0_11 = arith.constant 0 : index
    %13 = vector.load %arg3[%c0_10, %c0_11] : memref<32x64xbf16, #tpu.memory_space<vmem>>, vector<32x64xbf16>
    %14 = arith.truncf %12 : vector<64x1024xf32> to vector<64x1024xbf16>
    %cst_12 = arith.constant dense<0.000000e+00> : vector<32x1024xf32>
    %15 = tpu.matmul %13, %14, %cst_12 {dimension_numbers = #tpu.dot_dimension_numbers<[1], [0], [0], [1], [0, 0, 1, 1], [], []>} : vector<32x64xbf16>, vector<64x1024xbf16>, vector<32x1024xf32> -> vector<32x1024xf32>
    %16 = vector.broadcast %3 : vector<32x1xf32> to vector<32x1024xf32>
    %17 = arith.addf %15, %16 : vector<32x1024xf32>
    %cst_13 = arith.constant 0.000000e+00 : f32
    %18 = vector.broadcast %cst_13 : f32 to vector<32x1024xf32>
    %19 = arith.maximumf %17, %18 : vector<32x1024xf32>
    %c0_14 = arith.constant 0 : index
    %c0_15 = arith.constant 0 : index
    %20 = vector.load %arg4[%c0_14, %c0_15] : memref<16x32xbf16, #tpu.memory_space<vmem>>, vector<16x32xbf16>
    %21 = arith.truncf %19 : vector<32x1024xf32> to vector<32x1024xbf16>
    %cst_16 = arith.constant dense<0.000000e+00> : vector<16x1024xf32>
    %22 = tpu.matmul %20, %21, %cst_16 {dimension_numbers = #tpu.dot_dimension_numbers<[1], [0], [0], [1], [0, 0, 1, 1], [], []>} : vector<16x32xbf16>, vector<32x1024xbf16>, vector<16x1024xf32> -> vector<16x1024xf32>
    %23 = vector.broadcast %4 : vector<16x1xf32> to vector<16x1024xf32>
    %24 = arith.addf %22, %23 : vector<16x1024xf32>
    %cst_17 = arith.constant 0.000000e+00 : f32
    %25 = vector.broadcast %cst_17 : f32 to vector<16x1024xf32>
    %26 = arith.maximumf %24, %25 : vector<16x1024xf32>
    %27 = vector.broadcast %5 : vector<16x1xf32> to vector<16x1024xf32>
    %28 = arith.mulf %26, %27 : vector<16x1024xf32>
    %cst_18 = arith.constant dense<0.000000e+00> : vector<1024xf32>
    %29 = vector.multi_reduction <add>, %28, %cst_18 [0] : vector<16x1024xf32> to vector<1024xf32>
    %30 = vector.shape_cast %29 : vector<1024xf32> to vector<1x1024xf32>
    %31 = vector.broadcast %6 : vector<1x1xf32> to vector<1x1024xf32>
    %32 = arith.addf %30, %31 : vector<1x1024xf32>
    %c0_19 = arith.constant 0 : index
    %c0_20 = arith.constant 0 : index
    %33 = vector.load %arg6[%c0_19, %c0_20] : memref<1x1024xf32, #tpu.memory_space<vmem>>, vector<1x1024xf32>
    tpu.vector_store %arg6[%c0_19, %c0_20], %32 {strides = array<i32>} : memref<1x1024xf32, #tpu.memory_space<vmem>>, vector<1x1024xf32>,
    return
  }
  func.func @transform_0(%arg0: i32) -> (i32, i32) {
    %c0_i32 = arith.constant 0 : i32
    %c0_i32_0 = arith.constant 0 : i32
    return %arg0, %c0_i32 : i32, i32
  }
  func.func @transform_1(%arg0: i32) -> (i32, i32) {
    %c0_i32 = arith.constant 0 : i32
    %c0_i32_0 = arith.constant 0 : i32
    %c0_i32_1 = arith.constant 0 : i32
    return %c0_i32, %c0_i32_0 : i32, i32
  }
  func.func @transform_2(%arg0: i32) -> (i32, i32) {
    %c0_i32 = arith.constant 0 : i32
    %c0_i32_0 = arith.constant 0 : i32
    %c0_i32_1 = arith.constant 0 : i32
    return %c0_i32, %c0_i32_0 : i32, i32
  }
  func.func @transform_3(%arg0: i32) -> (i32, i32) {
    %c0_i32 = arith.constant 0 : i32
    %c0_i32_0 = arith.constant 0 : i32
    %c0_i32_1 = arith.constant 0 : i32
    return %c0_i32, %c0_i32_0 : i32, i32
  }
  func.func @transform_4(%arg0: i32) -> (i32, i32) {
    %c0_i32 = arith.constant 0 : i32
    %c0_i32_0 = arith.constant 0 : i32
    %c0_i32_1 = arith.constant 0 : i32
    return %c0_i32, %c0_i32_0 : i32, i32
  }
  func.func @transform_5(%arg0: i32) -> (i32, i32) {
    %c0_i32 = arith.constant 0 : i32
    %c0_i32_0 = arith.constant 0 : i32
    return %c0_i32, %arg0 : i32, i32
  }
}

</mosaic_0001>

<llo_original>
// kernel: _mlp_forward_impl.1
$region0: #{_mlp_forward_impl.1}
  #allocation0 [shape = 'u32[]', space=smem, size = 0x4, offset = 0x4, fixed_abs, tag = 'smem constant byte address 0x4 - core index']
  #allocation1 [shape = 'u32[144,128]{1,0:T(1,128)}', space=vmem, size = 0x12000, scoped, tag = 'internal scratch']
  %s0 = inlined_call_operand.hbm [shape: f32[1024,128], index: 0, kind: input, shape index: {}]
  %s1 = inlined_call_operand.vmem [shape: bf16[64,128], index: 1, kind: input, shape index: {}]
  %s2 = inlined_call_operand.vmem [shape: bf16[32,64], index: 2, kind: input, shape index: {}]
  %s3 = inlined_call_operand.vmem [shape: bf16[16,32], index: 3, kind: input, shape index: {}]
  %s4 = inlined_call_operand.vmem [shape: f32[136,1], index: 4, kind: input, shape index: {}]
  %s5 = inlined_call_operand.hbm [shape: f32[1,1024], index: 5, kind: output, shape index: {}]
  %s6 = sld [smem:[#allocation0]]
  $region34: #{_mlp_forward_impl.1} parent=0
    _
  %s8 = ssub.s32 1, %s6
  %s9 = scalar_select 0, %s8, %s6
  $region1: #{_mlp_forward_impl.1} parent=0
    #allocation2 [shape = 'u8[524288]{0}', space=vmem, size = 0x80000, scoped, tag = 'input window, operand 0, single buffered']
    #allocation3 [shape = 's32[1]{0}', space=sflag, size = 0x4, scoped, tag = 'scoped memory for _mlp_forward_impl.1']
    #allocation4 [shape = 's32[1]{0}', space=sflag, size = 0x4, scoped, tag = 'scoped memory for _mlp_forward_impl.1']
    #allocation5 [shape = 'u8[4096]{0}', space=vmem, size = 0x1000, scoped, tag = 'output window, operand 0, single buffered']
    %10 = vsyncpa [#allocation3], 0
    %11 = vsyncpa [#allocation4], 0
    // Predicated region
    $region2: #{_mlp_forward_impl.1} parent=1 // pred_check
      _
    $region3: #{_mlp_forward_impl.1} parent=1 // pred_check_branch
      %13 = sbr.rel (0) target = $region5
    $region4: #{_mlp_forward_impl.1} parent=1 // pred_region
      %s15 = ssub.s32 16384, 16384
      %16 = vsyncadd [#allocation3], %s15
      %s17 = sshll.u32 [#allocation2], 4
      %s18 = int_to_ptr.vmem [resolvable:$true] %s17
      %23 = dma.hbm_to_vmem [thread:$0]  %s0, 16384, %s18, [#allocation3], 128, 128, 8
    $region5: #{_mlp_forward_impl.1} parent=1 // pred_fallthru
      _
    // Predicated region
    $region6: #{_mlp_forward_impl.1} parent=1 // pred_check
      _
    $region7: #{_mlp_forward_impl.1} parent=1 // pred_check_branch
      %25 = sbr.rel (0) target = $region9
    $region8: #{_mlp_forward_impl.1} parent=1 // pred_region
      _
    $region9: #{_mlp_forward_impl.1} parent=1 // pred_fallthru
      _
    // Predicated region
    $region10: #{_mlp_forward_impl.1} parent=1 // pred_check
      _
    $region11: #{_mlp_forward_impl.1} parent=1 // pred_check_branch
      %27 = sbr.rel (0) target = $region13
    $region12: #{_mlp_forward_impl.1} parent=1 // pred_region
      _
    $region13: #{_mlp_forward_impl.1} parent=1 // pred_fallthru
      _
    // Predicated region
    $region14: #{_mlp_forward_impl.1} parent=1 // pred_check
      _
    $region15: #{_mlp_forward_impl.1} parent=1 // pred_check_branch
      %29 = sbr.rel (0) target = $region17
    $region16: #{_mlp_forward_impl.1} parent=1 // pred_region
      _
    $region17: #{_mlp_forward_impl.1} parent=1 // pred_fallthru
      _
    // Predicated region
    $region18: #{_mlp_forward_impl.1} parent=1 // pred_check
      _
    $region19: #{_mlp_forward_impl.1} parent=1 // pred_check_branch
      %31 = sbr.rel (0) target = $region21
    $region20: #{_mlp_forward_impl.1} parent=1 // pred_region
      _
    $region21: #{_mlp_forward_impl.1} parent=1 // pred_fallthru
      _
    // Predicated region
    $region22: #{_mlp_forward_impl.1} parent=1 // pred_check
      _
    $region23: #{_mlp_forward_impl.1} parent=1 // pred_check_branch
      %33 = sbr.rel (0) target = $region25
    $region24: #{_mlp_forward_impl.1} parent=1 // pred_region
      %34 = dma.done [#allocation3], 16384
    $region25: #{_mlp_forward_impl.1} parent=1 // pred_fallthru
      _
    %v36 = vld [vmem:[#allocation2] sm:$0xff]
    %v37 = vld [vmem:[#allocation2 + $0x8] sm:$0xff]
    %v38 = vld [vmem:[#allocation2 + $0x10] sm:$0xff]
    %v39 = vld [vmem:[#allocation2 + $0x18] sm:$0xff]
    %v40 = vld [vmem:[#allocation2 + $0x20] sm:$0xff]
    %v41 = vld [vmem:[#allocation2 + $0x28] sm:$0xff]
    %v42 = vld [vmem:[#allocation2 + $0x30] sm:$0xff]
    %v43 = vld [vmem:[#allocation2 + $0x38] sm:$0xff]
    %v44 = vld [vmem:[#allocation2 + $0x40] sm:$0xff]
    %v45 = vld [vmem:[#allocation2 + $0x48] sm:$0xff]
    %v46 = vld [vmem:[#allocation2 + $0x50] sm:$0xff]
    %v47 = vld [vmem:[#allocation2 + $0x58] sm:$0xff]
    %v48 = vld [vmem:[#allocation2 + $0x60] sm:$0xff]
    %v49 = vld [vmem:[#allocation2 + $0x68] sm:$0xff]
    %v50 = vld [vmem:[#allocation2 + $0x70] sm:$0xff]
    %v51 = vld [vmem:[#allocation2 + $0x78] sm:$0xff]
    %v52 = vld [vmem:[#allocation2 + $0x80] sm:$0xff]
    %v53 = vld [vmem:[#allocation2 + $0x88] sm:$0xff]
    %v54 = vld [vmem:[#allocation2 + $0x90] sm:$0xff]
    %v55 = vld [vmem:[#allocation2 + $0x98] sm:$0xff]
    %v56 = vld [vmem:[#allocation2 + $0xa0] sm:$0xff]
    %v57 = vld [vmem:[#allocation2 + $0xa8] sm:$0xff]
    %v58 = vld [vmem:[#allocation2 + $0xb0] sm:$0xff]
    %v59 = vld [vmem:[#allocation2 + $0xb8] sm:$0xff]
    %v60 = vld [vmem:[#allocation2 + $0xc0] sm:$0xff]
    %v61 = vld [vmem:[#allocation2 + $0xc8] sm:$0xff]
    %v62 = vld [vmem:[#allocation2 + $0xd0] sm:$0xff]
    %v63 = vld [vmem:[#allocation2 + $0xd8] sm:$0xff]
    %v64 = vld [vmem:[#allocation2 + $0xe0] sm:$0xff]
    %v65 = vld [vmem:[#allocation2 + $0xe8] sm:$0xff]
    %v66 = vld [vmem:[#allocation2 + $0xf0] sm:$0xff]
    %v67 = vld [vmem:[#allocation2 + $0xf8] sm:$0xff]
    %v68 = vld [vmem:[#allocation2 + $0x100] sm:$0xff]
    %v69 = vld [vmem:[#allocation2 + $0x108] sm:$0xff]
    %v70 = vld [vmem:[#allocation2 + $0x110] sm:$0xff]
    %v71 = vld [vmem:[#allocation2 + $0x118] sm:$0xff]
    %v72 = vld [vmem:[#allocation2 + $0x120] sm:$0xff]
    %v73 = vld [vmem:[#allocation2 + $0x128] sm:$0xff]
    %v74 = vld [vmem:[#allocation2 + $0x130] sm:$0xff]
    %v75 = vld [vmem:[#allocation2 + $0x138] sm:$0xff]
    %v76 = vld [vmem:[#allocation2 + $0x140] sm:$0xff]
    %v77 = vld [vmem:[#allocation2 + $0x148] sm:$0xff]
    %v78 = vld [vmem:[#allocation2 + $0x150] sm:$0xff]
    %v79 = vld [vmem:[#allocation2 + $0x158] sm:$0xff]
    %v80 = vld [vmem:[#allocation2 + $0x160] sm:$0xff]
    %v81 = vld [vmem:[#allocation2 + $0x168] sm:$0xff]
    %v82 = vld [vmem:[#allocation2 + $0x170] sm:$0xff]
    %v83 = vld [vmem:[#allocation2 + $0x178] sm:$0xff]
    %v84 = vld [vmem:[#allocation2 + $0x180] sm:$0xff]
    %v85 = vld [vmem:[#allocation2 + $0x188] sm:$0xff]
    %v86 = vld [vmem:[#allocation2 + $0x190] sm:$0xff]
    %v87 = vld [vmem:[#allocation2 + $0x198] sm:$0xff]
    %v88 = vld [vmem:[#allocation2 + $0x1a0] sm:$0xff]
    %v89 = vld [vmem:[#allocation2 + $0x1a8] sm:$0xff]
    %v90 = vld [vmem:[#allocation2 + $0x1b0] sm:$0xff]
    %v91 = vld [vmem:[#allocation2 + $0x1b8] sm:$0xff]
    %v92 = vld [vmem:[#allocation2 + $0x1c0] sm:$0xff]
    %v93 = vld [vmem:[#allocation2 + $0x1c8] sm:$0xff]
    %v94 = vld [vmem:[#allocation2 + $0x1d0] sm:$0xff]
    %v95 = vld [vmem:[#allocation2 + $0x1d8] sm:$0xff]
    %v96 = vld [vmem:[#allocation2 + $0x1e0] sm:$0xff]
    %v97 = vld [vmem:[#allocation2 + $0x1e8] sm:$0xff]
    %v98 = vld [vmem:[#allocation2 + $0x1f0] sm:$0xff]
    %v99 = vld [vmem:[#allocation2 + $0x1f8] sm:$0xff]
    %v100 = vld [vmem:[#allocation2 + $0x200] sm:$0xff]
    %v101 = vld [vmem:[#allocation2 + $0x208] sm:$0xff]
    %v102 = vld [vmem:[#allocation2 + $0x210] sm:$0xff]
    %v103 = vld [vmem:[#allocation2 + $0x218] sm:$0xff]
    %v104 = vld [vmem:[#allocation2 + $0x220] sm:$0xff]
    %v105 = vld [vmem:[#allocation2 + $0x228] sm:$0xff]
    %v106 = vld [vmem:[#allocation2 + $0x230] sm:$0xff]
    %v107 = vld [vmem:[#allocation2 + $0x238] sm:$0xff]
    %v108 = vld [vmem:[#allocation2 + $0x240] sm:$0xff]
    %v109 = vld [vmem:[#allocation2 + $0x248] sm:$0xff]
    %v110 = vld [vmem:[#allocation2 + $0x250] sm:$0xff]
    %v111 = vld [vmem:[#allocation2 + $0x258] sm:$0xff]
    %v112 = vld [vmem:[#allocation2 + $0x260] sm:$0xff]
    %v113 = vld [vmem:[#allocation2 + $0x268] sm:$0xff]
    %v114 = vld [vmem:[#allocation2 + $0x270] sm:$0xff]
    %v115 = vld [vmem:[#allocation2 + $0x278] sm:$0xff]
    %v116 = vld [vmem:[#allocation2 + $0x280] sm:$0xff]
    %v117 = vld [vmem:[#allocation2 + $0x288] sm:$0xff]
    %v118 = vld [vmem:[#allocation2 + $0x290] sm:$0xff]
    %v119 = vld [vmem:[#allocation2 + $0x298] sm:$0xff]
    %v120 = vld [vmem:[#allocation2 + $0x2a0] sm:$0xff]
    %v121 = vld [vmem:[#allocation2 + $0x2a8] sm:$0xff]
    %v122 = vld [vmem:[#allocation2 + $0x2b0] sm:$0xff]
    %v123 = vld [vmem:[#allocation2 + $0x2b8] sm:$0xff]
    %v124 = vld [vmem:[#allocation2 + $0x2c0] sm:$0xff]
    %v125 = vld [vmem:[#allocation2 + $0x2c8] sm:$0xff]
    %v126 = vld [vmem:[#allocation2 + $0x2d0] sm:$0xff]
    %v127 = vld [vmem:[#allocation2 + $0x2d8] sm:$0xff]
    %v128 = vld [vmem:[#allocation2 + $0x2e0] sm:$0xff]
    %v129 = vld [vmem:[#allocation2 + $0x2e8] sm:$0xff]
    %v130 = vld [vmem:[#allocation2 + $0x2f0] sm:$0xff]
    %v131 = vld [vmem:[#allocation2 + $0x2f8] sm:$0xff]
    %v132 = vld [vmem:[#allocation2 + $0x300] sm:$0xff]
    %v133 = vld [vmem:[#allocation2 + $0x308] sm:$0xff]
    %v134 = vld [vmem:[#allocation2 + $0x310] sm:$0xff]
    %v135 = vld [vmem:[#allocation2 + $0x318] sm:$0xff]
    %v136 = vld [vmem:[#allocation2 + $0x320] sm:$0xff]
    %v137 = vld [vmem:[#allocation2 + $0x328] sm:$0xff]
    %v138 = vld [vmem:[#allocation2 + $0x330] sm:$0xff]
    %v139 = vld [vmem:[#allocation2 + $0x338] sm:$0xff]
    %v140 = vld [vmem:[#allocation2 + $0x340] sm:$0xff]
    %v141 = vld [vmem:[#allocation2 + $0x348] sm:$0xff]
    %v142 = vld [vmem:[#allocation2 + $0x350] sm:$0xff]
    %v143 = vld [vmem:[#allocation2 + $0x358] sm:$0xff]
    %v144 = vld [vmem:[#allocation2 + $0x360] sm:$0xff]
    %v145 = vld [vmem:[#allocation2 + $0x368] sm:$0xff]
    %v146 = vld [vmem:[#allocation2 + $0x370] sm:$0xff]
    %v147 = vld [vmem:[#allocation2 + $0x378] sm:$0xff]
    %v148 = vld [vmem:[#allocation2 + $0x380] sm:$0xff]
    %v149 = vld [vmem:[#allocation2 + $0x388] sm:$0xff]
    %v150 = vld [vmem:[#allocation2 + $0x390] sm:$0xff]
    %v151 = vld [vmem:[#allocation2 + $0x398] sm:$0xff]
    %v152 = vld [vmem:[#allocation2 + $0x3a0] sm:$0xff]
    %v153 = vld [vmem:[#allocation2 + $0x3a8] sm:$0xff]
    %v154 = vld [vmem:[#allocation2 + $0x3b0] sm:$0xff]
    %v155 = vld [vmem:[#allocation2 + $0x3b8] sm:$0xff]
    %v156 = vld [vmem:[#allocation2 + $0x3c0] sm:$0xff]
    %v157 = vld [vmem:[#allocation2 + $0x3c8] sm:$0xff]
    %v158 = vld [vmem:[#allocation2 + $0x3d0] sm:$0xff]
    %v159 = vld [vmem:[#allocation2 + $0x3d8] sm:$0xff]
    %v160 = vld [vmem:[#allocation2 + $0x3e0] sm:$0xff]
    %v161 = vld [vmem:[#allocation2 + $0x3e8] sm:$0xff]
    %v162 = vld [vmem:[#allocation2 + $0x3f0] sm:$0xff]
    %v163 = vld [vmem:[#allocation2 + $0x3f8] sm:$0xff]
    %v164 = vpack.c.bf16 %v37, %v36
    %v165 = vpack.c.bf16 %v39, %v38
    %v166 = vpack.c.bf16 %v41, %v40
    %v167 = vpack.c.bf16 %v43, %v42
    %v168 = vpack.c.bf16 %v45, %v44
    %v169 = vpack.c.bf16 %v47, %v46
    %v170 = vpack.c.bf16 %v49, %v48
    %v171 = vpack.c.bf16 %v51, %v50
    %v172 = vpack.c.bf16 %v53, %v52
    %v173 = vpack.c.bf16 %v55, %v54
    %v174 = vpack.c.bf16 %v57, %v56
    %v175 = vpack.c.bf16 %v59, %v58
    %v176 = vpack.c.bf16 %v61, %v60
    %v177 = vpack.c.bf16 %v63, %v62
    %v178 = vpack.c.bf16 %v65, %v64
    %v179 = vpack.c.bf16 %v67, %v66
    %v180 = vpack.c.bf16 %v69, %v68
    %v181 = vpack.c.bf16 %v71, %v70
    %v182 = vpack.c.bf16 %v73, %v72
    %v183 = vpack.c.bf16 %v75, %v74
    %v184 = vpack.c.bf16 %v77, %v76
    %v185 = vpack.c.bf16 %v79, %v78
    %v186 = vpack.c.bf16 %v81, %v80
    %v187 = vpack.c.bf16 %v83, %v82
    %v188 = vpack.c.bf16 %v85, %v84
    %v189 = vpack.c.bf16 %v87, %v86
    %v190 = vpack.c.bf16 %v89, %v88
    %v191 = vpack.c.bf16 %v91, %v90
    %v192 = vpack.c.bf16 %v93, %v92
    %v193 = vpack.c.bf16 %v95, %v94
    %v194 = vpack.c.bf16 %v97, %v96
    %v195 = vpack.c.bf16 %v99, %v98
    %v196 = vpack.c.bf16 %v101, %v100
    %v197 = vpack.c.bf16 %v103, %v102
    %v198 = vpack.c.bf16 %v105, %v104
    %v199 = vpack.c.bf16 %v107, %v106
    %v200 = vpack.c.bf16 %v109, %v108
    %v201 = vpack.c.bf16 %v111, %v110
    %v202 = vpack.c.bf16 %v113, %v112
    %v203 = vpack.c.bf16 %v115, %v114
    %v204 = vpack.c.bf16 %v117, %v116
    %v205 = vpack.c.bf16 %v119, %v118
    %v206 = vpack.c.bf16 %v121, %v120
    %v207 = vpack.c.bf16 %v123, %v122
    %v208 = vpack.c.bf16 %v125, %v124
    %v209 = vpack.c.bf16 %v127, %v126
    %v210 = vpack.c.bf16 %v129, %v128
    %v211 = vpack.c.bf16 %v131, %v130
    %v212 = vpack.c.bf16 %v133, %v132
    %v213 = vpack.c.bf16 %v135, %v134
    %v214 = vpack.c.bf16 %v137, %v136
    %v215 = vpack.c.bf16 %v139, %v138
    %v216 = vpack.c.bf16 %v141, %v140
    %v217 = vpack.c.bf16 %v143, %v142
    %v218 = vpack.c.bf16 %v145, %v144
    %v219 = vpack.c.bf16 %v147, %v146
    %v220 = vpack.c.bf16 %v149, %v148
    %v221 = vpack.c.bf16 %v151, %v150
    %v222 = vpack.c.bf16 %v153, %v152
    %v223 = vpack.c.bf16 %v155, %v154
    %v224 = vpack.c.bf16 %v157, %v156
    %v225 = vpack.c.bf16 %v159, %v158
    %v226 = vpack.c.bf16 %v161, %v160
    %v227 = vpack.c.bf16 %v163, %v162
    %v228 = vld [vmem:[%s4] sm:$0xff]
    %v229 = vld [vmem:[%s4 + $0x8] sm:$0xff]
    %v230 = vld [vmem:[%s4 + $0x10] sm:$0xff]
    %v231 = vld [vmem:[%s4 + $0x18] sm:$0xff]
    %v232 = vld [vmem:[%s4 + $0x20] sm:$0xff]
    %v233 = vld [vmem:[%s4 + $0x28] sm:$0xff]
    %v234 = vld [vmem:[%s4 + $0x30] sm:$0xff]
    %v235 = vld [vmem:[%s4 + $0x38] sm:$0xff]
    %v236 = vld [vmem:[%s4 + $0x40] sm:$0xff]
    %v237 = vld [vmem:[%s4 + $0x48] sm:$0xff]
    %v238 = vld [vmem:[%s4 + $0x50] sm:$0xff]
    %v239 = vld [vmem:[%s4 + $0x58] sm:$0xff]
    %v240 = vld [vmem:[%s4 + $0x60] sm:$0xff]
    %v241 = vld [vmem:[%s4 + $0x68] sm:$0xff]
    %v242 = vld [vmem:[%s4 + $0x70] sm:$0xff]
    %v243 = vld [vmem:[%s4 + $0x78] sm:$0xff]
    %v244 = vld [vmem:[%s4 + $0x80] sm:$0x1]
    %v245 = vld [vmem:[%s1] sm:$0xf]
    %v246 = vld [vmem:[%s1 + $0x4] sm:$0xf]
    %v247 = vld [vmem:[%s1 + $0x8] sm:$0xf]
    %v248 = vld [vmem:[%s1 + $0xc] sm:$0xf]
    %v249 = vld [vmem:[%s1 + $0x10] sm:$0xf]
    %v250 = vld [vmem:[%s1 + $0x14] sm:$0xf]
    %v251 = vld [vmem:[%s1 + $0x18] sm:$0xf]
    %v252 = vld [vmem:[%s1 + $0x1c] sm:$0xf]
    %254 = vset.pattern.permute.xlu0 0
    %255 = vperm.xlu0 %254, %v228
    %v256 = vpop.permute.xlu0 %255
    %259 = vset.pattern.permute.xlu0 0
    %260 = vperm.xlu0 %259, %v229
    %v261 = vpop.permute.xlu0 %260
    %264 = vset.pattern.permute.xlu0 0
    %265 = vperm.xlu0 %264, %v230
    %v266 = vpop.permute.xlu0 %265
    %269 = vset.pattern.permute.xlu0 0
    %270 = vperm.xlu0 %269, %v231
    %v271 = vpop.permute.xlu0 %270
    %274 = vset.pattern.permute.xlu0 0
    %275 = vperm.xlu0 %274, %v232
    %v276 = vpop.permute.xlu0 %275
    %279 = vset.pattern.permute.xlu0 0
    %280 = vperm.xlu0 %279, %v233
    %v281 = vpop.permute.xlu0 %280
    %284 = vset.pattern.permute.xlu0 0
    %285 = vperm.xlu0 %284, %v234
    %v286 = vpop.permute.xlu0 %285
    %289 = vset.pattern.permute.xlu0 0
    %290 = vperm.xlu0 %289, %v235
    %v291 = vpop.permute.xlu0 %290
    %v301 = vunpack.c.l.b16 %v245
    %v302 = vunpack.c.l.b16 %v246
    %v303 = vunpack.c.l.b16 %v247
    %v304 = vunpack.c.l.b16 %v248
    %v305 = vunpack.c.l.b16 %v249
    %v306 = vunpack.c.l.b16 %v250
    %v307 = vunpack.c.l.b16 %v251
    %v308 = vunpack.c.l.b16 %v252
    %v309 = vpack.c.b16 %v302, %v301
    %v310 = vpack.c.b16 %v304, %v303
    %v311 = vpack.c.b16 %v306, %v305
    %v312 = vpack.c.b16 %v308, %v307
    %317 = vmatprep.subr.bf16.mxu0 0
    %318 = vmatpush1.bf16.xpose.msra.mxu0 %v171
    %319 = vmatprep.subr.bf16.mxu0 0
    %320 = vmatpush1.bf16.xpose.msra.mxu0 %v170
    %321 = vmatprep.subr.bf16.mxu0 0
    %322 = vmatpush1.bf16.xpose.msra.mxu0 %v169
    %323 = vmatprep.subr.bf16.mxu0 0
    %324 = vmatpush1.bf16.xpose.msra.mxu0 %v168
    %325 = vmatprep.subr.bf16.mxu0 0
    %326 = vmatpush1.bf16.xpose.msra.mxu0 %v167
    %327 = vmatprep.subr.bf16.mxu0 0
    %328 = vmatpush1.bf16.xpose.msra.mxu0 %v166
    %329 = vmatprep.subr.bf16.mxu0 0
    %330 = vmatpush1.bf16.xpose.msra.mxu0 %v165
    %331 = vmatprep.subr.bf16.mxu0 0
    %332 = vmatpush1.bf16.xpose.msra.mxu0 %v164
    %333 = vmatprep.subr.bf16.mxu0 0
    %334 = vmatpush2.bf16.xpose.msra.mxu0 %v179
    %335 = vmatprep.subr.bf16.mxu0 0
    %336 = vmatpush2.bf16.xpose.msra.mxu0 %v178
    %337 = vmatprep.subr.bf16.mxu0 0
    %338 = vmatpush2.bf16.xpose.msra.mxu0 %v177
    %339 = vmatprep.subr.bf16.mxu0 0
    %340 = vmatpush2.bf16.xpose.msra.mxu0 %v176
    %341 = vmatprep.subr.bf16.mxu0 0
    %342 = vmatpush2.bf16.xpose.msra.mxu0 %v175
    %343 = vmatprep.subr.bf16.mxu0 0
    %344 = vmatpush2.bf16.xpose.msra.mxu0 %v174
    %345 = vmatprep.subr.bf16.mxu0 0
    %346 = vmatpush2.bf16.xpose.msra.mxu0 %v173
    %347 = vmatprep.subr.bf16.mxu0 0
    %348 = vmatpush2.bf16.xpose.msra.mxu0 %v172
    %349 = vmatprep.mubr.bf16.mxu0 0
    %350 = vmatmul.mubr.bf16.gmra.mxu0 %v309
    %v351 = vpop.f32.mrf.mxu0
    %v352 = vadd.f32 %v256, %v351
    %v353 = vpop.f32.mrf.mxu0
    %v354 = vadd.f32 %v256, %v353
    %v355 = vpop.f32.mrf.mxu0
    %v356 = vadd.f32 %v261, %v355
    %v357 = vpop.f32.mrf.mxu0
    %v358 = vadd.f32 %v261, %v357
    %359 = vmatprep.mubr.bf16.mxu0 0
    %360 = vmatmul.mubr.bf16.gmra.mxu0 %v310
    %v361 = vpop.f32.mrf.mxu0
    %v362 = vadd.f32 %v266, %v361
    %v363 = vpop.f32.mrf.mxu0
    %v364 = vadd.f32 %v266, %v363
    %v365 = vpop.f32.mrf.mxu0
    %v366 = vadd.f32 %v271, %v365
    %v367 = vpop.f32.mrf.mxu0
    %v368 = vadd.f32 %v271, %v367
    %369 = vmatprep.mubr.bf16.mxu0 0
    %370 = vmatmul.mubr.bf16.gmra.mxu0 %v311
    %v371 = vpop.f32.mrf.mxu0
    %v372 = vadd.f32 %v276, %v371
    %v373 = vpop.f32.mrf.mxu0
    %v374 = vadd.f32 %v276, %v373
    %v375 = vpop.f32.mrf.mxu0
    %v376 = vadd.f32 %v281, %v375
    %v377 = vpop.f32.mrf.mxu0
    %v378 = vadd.f32 %v281, %v377
    %379 = vmatprep.mubr.bf16.mxu0 0
    %380 = vmatmul.mubr.bf16.gmra.mxu0 %v312
    %v381 = vpop.f32.mrf.mxu0
    %v382 = vadd.f32 %v286, %v381
    %v383 = vpop.f32.mrf.mxu0
    %v384 = vadd.f32 %v286, %v383
    %v385 = vpop.f32.mrf.mxu0
    %v386 = vadd.f32 %v291, %v385
    %v387 = vpop.f32.mrf.mxu0
    %v388 = vadd.f32 %v291, %v387
    %389 = vdwg.mxu0
    %390 = vmatprep.subr.bf16.mxu0 0
    %391 = vmatpush1.bf16.xpose.msra.mxu0 %v187
    %392 = vmatprep.subr.bf16.mxu0 0
    %393 = vmatpush1.bf16.xpose.msra.mxu0 %v186
    %394 = vmatprep.subr.bf16.mxu0 0
    %395 = vmatpush1.bf16.xpose.msra.mxu0 %v185
    %396 = vmatprep.subr.bf16.mxu0 0
    %397 = vmatpush1.bf16.xpose.msra.mxu0 %v184
    %398 = vmatprep.subr.bf16.mxu0 0
    %399 = vmatpush1.bf16.xpose.msra.mxu0 %v183
    %400 = vmatprep.subr.bf16.mxu0 0
    %401 = vmatpush1.bf16.xpose.msra.mxu0 %v182
    %402 = vmatprep.subr.bf16.mxu0 0
    %403 = vmatpush1.bf16.xpose.msra.mxu0 %v181
    %404 = vmatprep.subr.bf16.mxu0 0
    %405 = vmatpush1.bf16.xpose.msra.mxu0 %v180
    %406 = vmatprep.subr.bf16.mxu0 0
    %407 = vmatpush2.bf16.xpose.msra.mxu0 %v195
    %408 = vmatprep.subr.bf16.mxu0 0
    %409 = vmatpush2.bf16.xpose.msra.mxu0 %v194
    %410 = vmatprep.subr.bf16.mxu0 0
    %411 = vmatpush2.bf16.xpose.msra.mxu0 %v193
    %412 = vmatprep.subr.bf16.mxu0 0
    %413 = vmatpush2.bf16.xpose.msra.mxu0 %v192
    %414 = vmatprep.subr.bf16.mxu0 0
    %415 = vmatpush2.bf16.xpose.msra.mxu0 %v191
    %416 = vmatprep.subr.bf16.mxu0 0
    %417 = vmatpush2.bf16.xpose.msra.mxu0 %v190
    %418 = vmatprep.subr.bf16.mxu0 0
    %419 = vmatpush2.bf16.xpose.msra.mxu0 %v189
    %420 = vmatprep.subr.bf16.mxu0 0
    %421 = vmatpush2.bf16.xpose.msra.mxu0 %v188
    %422 = vmatprep.mubr.bf16.mxu0 0
    %423 = vmatmul.mubr.bf16.gmra.mxu0 %v309
    %v424 = vpop.f32.mrf.mxu0
    %v425 = vadd.f32 %v256, %v424
    %v426 = vpop.f32.mrf.mxu0
    %v427 = vadd.f32 %v256, %v426
    %v428 = vpop.f32.mrf.mxu0
    %v429 = vadd.f32 %v261, %v428
    %v430 = vpop.f32.mrf.mxu0
    %v431 = vadd.f32 %v261, %v430
    %432 = vmatprep.mubr.bf16.mxu0 0
    %433 = vmatmul.mubr.bf16.gmra.mxu0 %v310
    %v434 = vpop.f32.mrf.mxu0
    %v435 = vadd.f32 %v266, %v434
    %v436 = vpop.f32.mrf.mxu0
    %v437 = vadd.f32 %v266, %v436
    %v438 = vpop.f32.mrf.mxu0
    %v439 = vadd.f32 %v271, %v438
    %v440 = vpop.f32.mrf.mxu0
    %v441 = vadd.f32 %v271, %v440
    %442 = vmatprep.mubr.bf16.mxu0 0
    %443 = vmatmul.mubr.bf16.gmra.mxu0 %v311
    %v444 = vpop.f32.mrf.mxu0
    %v445 = vadd.f32 %v276, %v444
    %v446 = vpop.f32.mrf.mxu0
    %v447 = vadd.f32 %v276, %v446
    %v448 = vpop.f32.mrf.mxu0
    %v449 = vadd.f32 %v281, %v448
    %v450 = vpop.f32.mrf.mxu0
    %v451 = vadd.f32 %v281, %v450
    %452 = vmatprep.mubr.bf16.mxu0 0
    %453 = vmatmul.mubr.bf16.gmra.mxu0 %v312
    %v454 = vpop.f32.mrf.mxu0
    %v455 = vadd.f32 %v286, %v454
    %v456 = vpop.f32.mrf.mxu0
    %v457 = vadd.f32 %v286, %v456
    %v458 = vpop.f32.mrf.mxu0
    %v459 = vadd.f32 %v291, %v458
    %v460 = vpop.f32.mrf.mxu0
    %v461 = vadd.f32 %v291, %v460
    %462 = vdwg.mxu0
    %463 = vmatprep.subr.bf16.mxu0 0
    %464 = vmatpush1.bf16.xpose.msra.mxu0 %v203
    %465 = vmatprep.subr.bf16.mxu0 0
    %466 = vmatpush1.bf16.xpose.msra.mxu0 %v202
    %467 = vmatprep.subr.bf16.mxu0 0
    %468 = vmatpush1.bf16.xpose.msra.mxu0 %v201
    %469 = vmatprep.subr.bf16.mxu0 0
    %470 = vmatpush1.bf16.xpose.msra.mxu0 %v200
    %471 = vmatprep.subr.bf16.mxu0 0
    %472 = vmatpush1.bf16.xpose.msra.mxu0 %v199
    %473 = vmatprep.subr.bf16.mxu0 0
    %474 = vmatpush1.bf16.xpose.msra.mxu0 %v198
    %475 = vmatprep.subr.bf16.mxu0 0
    %476 = vmatpush1.bf16.xpose.msra.mxu0 %v197
    %477 = vmatprep.subr.bf16.mxu0 0
    %478 = vmatpush1.bf16.xpose.msra.mxu0 %v196
    %479 = vmatprep.subr.bf16.mxu0 0
    %480 = vmatpush2.bf16.xpose.msra.mxu0 %v211
    %481 = vmatprep.subr.bf16.mxu0 0
    %482 = vmatpush2.bf16.xpose.msra.mxu0 %v210
    %483 = vmatprep.subr.bf16.mxu0 0
    %484 = vmatpush2.bf16.xpose.msra.mxu0 %v209
    %485 = vmatprep.subr.bf16.mxu0 0
    %486 = vmatpush2.bf16.xpose.msra.mxu0 %v208
    %487 = vmatprep.subr.bf16.mxu0 0
    %488 = vmatpush2.bf16.xpose.msra.mxu0 %v207
    %489 = vmatprep.subr.bf16.mxu0 0
    %490 = vmatpush2.bf16.xpose.msra.mxu0 %v206
    %491 = vmatprep.subr.bf16.mxu0 0
    %492 = vmatpush2.bf16.xpose.msra.mxu0 %v205
    %493 = vmatprep.subr.bf16.mxu0 0
    %494 = vmatpush2.bf16.xpose.msra.mxu0 %v204
    %495 = vmatprep.mubr.bf16.mxu0 0
    %496 = vmatmul.mubr.bf16.gmra.mxu0 %v309
    %v497 = vpop.f32.mrf.mxu0
    %v498 = vadd.f32 %v256, %v497
    %v499 = vpop.f32.mrf.mxu0
    %v500 = vadd.f32 %v256, %v499
    %v501 = vpop.f32.mrf.mxu0
    %v502 = vadd.f32 %v261, %v501
    %v503 = vpop.f32.mrf.mxu0
    %v504 = vadd.f32 %v261, %v503
    %505 = vmatprep.mubr.bf16.mxu0 0
    %506 = vmatmul.mubr.bf16.gmra.mxu0 %v310
    %v507 = vpop.f32.mrf.mxu0
    %v508 = vadd.f32 %v266, %v507
    %v509 = vpop.f32.mrf.mxu0
    %v510 = vadd.f32 %v266, %v509
    %v511 = vpop.f32.mrf.mxu0
    %v512 = vadd.f32 %v271, %v511
    %v513 = vpop.f32.mrf.mxu0
    %v514 = vadd.f32 %v271, %v513
    %515 = vmatprep.mubr.bf16.mxu0 0
    %516 = vmatmul.mubr.bf16.gmra.mxu0 %v311
    %v517 = vpop.f32.mrf.mxu0
    %v518 = vadd.f32 %v276, %v517
    %v519 = vpop.f32.mrf.mxu0
    %v520 = vadd.f32 %v276, %v519
    %v521 = vpop.f32.mrf.mxu0
    %v522 = vadd.f32 %v281, %v521
    %v523 = vpop.f32.mrf.mxu0
    %v524 = vadd.f32 %v281, %v523
    %525 = vmatprep.mubr.bf16.mxu0 0
    %526 = vmatmul.mubr.bf16.gmra.mxu0 %v312
    %v527 = vpop.f32.mrf.mxu0
    %v528 = vadd.f32 %v286, %v527
    %v529 = vpop.f32.mrf.mxu0
    %v530 = vadd.f32 %v286, %v529
    %v531 = vpop.f32.mrf.mxu0
    %v532 = vadd.f32 %v291, %v531
    %v533 = vpop.f32.mrf.mxu0
    %v534 = vadd.f32 %v291, %v533
    %535 = vdwg.mxu0
    %536 = vmatprep.subr.bf16.mxu0 0
    %537 = vmatpush1.bf16.xpose.msra.mxu0 %v219
    %538 = vmatprep.subr.bf16.mxu0 0
    %539 = vmatpush1.bf16.xpose.msra.mxu0 %v218
    %540 = vmatprep.subr.bf16.mxu0 0
    %541 = vmatpush1.bf16.xpose.msra.mxu0 %v217
    %542 = vmatprep.subr.bf16.mxu0 0
    %543 = vmatpush1.bf16.xpose.msra.mxu0 %v216
    %544 = vmatprep.subr.bf16.mxu0 0
    %545 = vmatpush1.bf16.xpose.msra.mxu0 %v215
    %546 = vmatprep.subr.bf16.mxu0 0
    %547 = vmatpush1.bf16.xpose.msra.mxu0 %v214
    %548 = vmatprep.subr.bf16.mxu0 0
    %549 = vmatpush1.bf16.xpose.msra.mxu0 %v213
    %550 = vmatprep.subr.bf16.mxu0 0
    %551 = vmatpush1.bf16.xpose.msra.mxu0 %v212
    %552 = vmatprep.subr.bf16.mxu0 0
    %553 = vmatpush2.bf16.xpose.msra.mxu0 %v227
    %554 = vmatprep.subr.bf16.mxu0 0
    %555 = vmatpush2.bf16.xpose.msra.mxu0 %v226
    %556 = vmatprep.subr.bf16.mxu0 0
    %557 = vmatpush2.bf16.xpose.msra.mxu0 %v225
    %558 = vmatprep.subr.bf16.mxu0 0
    %559 = vmatpush2.bf16.xpose.msra.mxu0 %v224
    %560 = vmatprep.subr.bf16.mxu0 0
    %561 = vmatpush2.bf16.xpose.msra.mxu0 %v223
    %562 = vmatprep.subr.bf16.mxu0 0
    %563 = vmatpush2.bf16.xpose.msra.mxu0 %v222
    %564 = vmatprep.subr.bf16.mxu0 0
    %565 = vmatpush2.bf16.xpose.msra.mxu0 %v221
    %566 = vmatprep.subr.bf16.mxu0 0
    %567 = vmatpush2.bf16.xpose.msra.mxu0 %v220
    %568 = vmatprep.mubr.bf16.mxu0 0
    %569 = vmatmul.mubr.bf16.gmra.mxu0 %v309
    %v570 = vpop.f32.mrf.mxu0
    %v571 = vadd.f32 %v256, %v570
    %v572 = vpop.f32.mrf.mxu0
    %v573 = vadd.f32 %v256, %v572
    %v574 = vpop.f32.mrf.mxu0
    %v575 = vadd.f32 %v261, %v574
    %v576 = vpop.f32.mrf.mxu0
    %v577 = vadd.f32 %v261, %v576
    %578 = vmatprep.mubr.bf16.mxu0 0
    %579 = vmatmul.mubr.bf16.gmra.mxu0 %v310
    %v580 = vpop.f32.mrf.mxu0
    %v581 = vadd.f32 %v266, %v580
    %v582 = vpop.f32.mrf.mxu0
    %v583 = vadd.f32 %v266, %v582
    %v584 = vpop.f32.mrf.mxu0
    %v585 = vadd.f32 %v271, %v584
    %v586 = vpop.f32.mrf.mxu0
    %v587 = vadd.f32 %v271, %v586
    %588 = vmatprep.mubr.bf16.mxu0 0
    %589 = vmatmul.mubr.bf16.gmra.mxu0 %v311
    %v590 = vpop.f32.mrf.mxu0
    %v591 = vadd.f32 %v276, %v590
    %v592 = vpop.f32.mrf.mxu0
    %v593 = vadd.f32 %v276, %v592
    %v594 = vpop.f32.mrf.mxu0
    %v595 = vadd.f32 %v281, %v594
    %v596 = vpop.f32.mrf.mxu0
    %v597 = vadd.f32 %v281, %v596
    %598 = vmatprep.mubr.bf16.mxu0 0
    %599 = vmatmul.mubr.bf16.gmra.mxu0 %v312
    %v600 = vpop.f32.mrf.mxu0
    %v601 = vadd.f32 %v286, %v600
    %v602 = vpop.f32.mrf.mxu0
    %v603 = vadd.f32 %v286, %v602
    %v604 = vpop.f32.mrf.mxu0
    %v605 = vadd.f32 %v291, %v604
    %v606 = vpop.f32.mrf.mxu0
    %v607 = vadd.f32 %v291, %v606
    %608 = vdwg.mxu0
    %v609 = vmax.f32 %v352, 0.0
    %v610 = vmax.f32 %v354, 0.0
    %v611 = vmax.f32 %v425, 0.0
    %v612 = vmax.f32 %v427, 0.0
    %v613 = vmax.f32 %v498, 0.0
    %v614 = vmax.f32 %v500, 0.0
    %v615 = vmax.f32 %v571, 0.0
    %v616 = vmax.f32 %v573, 0.0
    %v617 = vmax.f32 %v356, 0.0
    %v618 = vmax.f32 %v358, 0.0
    %v619 = vmax.f32 %v429, 0.0
    %v620 = vmax.f32 %v431, 0.0
    %v621 = vmax.f32 %v502, 0.0
    %v622 = vmax.f32 %v504, 0.0
    %v623 = vmax.f32 %v575, 0.0
    %v624 = vmax.f32 %v577, 0.0
    %v625 = vmax.f32 %v362, 0.0
    %v626 = vmax.f32 %v364, 0.0
    %v627 = vmax.f32 %v435, 0.0
    %v628 = vmax.f32 %v437, 0.0
    %v629 = vmax.f32 %v508, 0.0
    %v630 = vmax.f32 %v510, 0.0
    %v631 = vmax.f32 %v581, 0.0
    %v632 = vmax.f32 %v583, 0.0
    %v633 = vmax.f32 %v366, 0.0
    %v634 = vmax.f32 %v368, 0.0
    %v635 = vmax.f32 %v439, 0.0
    %v636 = vmax.f32 %v441, 0.0
    %v637 = vmax.f32 %v512, 0.0
    %v638 = vmax.f32 %v514, 0.0
    %v639 = vmax.f32 %v585, 0.0
    %v640 = vmax.f32 %v587, 0.0
    %v641 = vmax.f32 %v372, 0.0
    %v642 = vmax.f32 %v374, 0.0
    %v643 = vmax.f32 %v445, 0.0
    %v644 = vmax.f32 %v447, 0.0
    %v645 = vmax.f32 %v518, 0.0
    %v646 = vmax.f32 %v520, 0.0
    %v647 = vmax.f32 %v591, 0.0
    %v648 = vmax.f32 %v593, 0.0
    %v649 = vmax.f32 %v376, 0.0
    %v650 = vmax.f32 %v378, 0.0
    %v651 = vmax.f32 %v449, 0.0
    %v652 = vmax.f32 %v451, 0.0
    %v653 = vmax.f32 %v522, 0.0
    %v654 = vmax.f32 %v524, 0.0
    %v655 = vmax.f32 %v595, 0.0
    %v656 = vmax.f32 %v597, 0.0
    %v657 = vmax.f32 %v382, 0.0
    %v658 = vmax.f32 %v384, 0.0
    %v659 = vmax.f32 %v455, 0.0
    %v660 = vmax.f32 %v457, 0.0
    %v661 = vmax.f32 %v528, 0.0
    %v662 = vmax.f32 %v530, 0.0
    %v663 = vmax.f32 %v601, 0.0
    %v664 = vmax.f32 %v603, 0.0
    %v665 = vmax.f32 %v386, 0.0
    %v666 = vmax.f32 %v388, 0.0
    %v667 = vmax.f32 %v459, 0.0
    %v668 = vmax.f32 %v461, 0.0
    %v669 = vmax.f32 %v532, 0.0
    %v670 = vmax.f32 %v534, 0.0
    %v671 = vmax.f32 %v605, 0.0
    %v672 = vmax.f32 %v607, 0.0
    %v673 = vld [vmem:[%s2] sm:$0xf]
    %v674 = vld [vmem:[%s2 + $0x4] sm:$0xf]
    %v675 = vld [vmem:[%s2 + $0x8] sm:$0xf]
    %v676 = vld [vmem:[%s2 + $0xc] sm:$0xf]
    %v677 = vpack.c.bf16 %v617, %v609
    %v678 = vpack.c.bf16 %v618, %v610
    %v679 = vpack.c.bf16 %v619, %v611
    %v680 = vpack.c.bf16 %v620, %v612
    %v681 = vpack.c.bf16 %v621, %v613
    %v682 = vpack.c.bf16 %v622, %v614
    %v683 = vpack.c.bf16 %v623, %v615
    %v684 = vpack.c.bf16 %v624, %v616
    %v685 = vpack.c.bf16 %v633, %v625
    %v686 = vpack.c.bf16 %v634, %v626
    %v687 = vpack.c.bf16 %v635, %v627
    %v688 = vpack.c.bf16 %v636, %v628
    %v689 = vpack.c.bf16 %v637, %v629
    %v690 = vpack.c.bf16 %v638, %v630
    %v691 = vpack.c.bf16 %v639, %v631
    %v692 = vpack.c.bf16 %v640, %v632
    %v693 = vpack.c.bf16 %v649, %v641
    %v694 = vpack.c.bf16 %v650, %v642
    %v695 = vpack.c.bf16 %v651, %v643
    %v696 = vpack.c.bf16 %v652, %v644
    %v697 = vpack.c.bf16 %v653, %v645
    %v698 = vpack.c.bf16 %v654, %v646
    %v699 = vpack.c.bf16 %v655, %v647
    %v700 = vpack.c.bf16 %v656, %v648
    %v701 = vpack.c.bf16 %v665, %v657
    %v702 = vpack.c.bf16 %v666, %v658
    %v703 = vpack.c.bf16 %v667, %v659
    %v704 = vpack.c.bf16 %v668, %v660
    %v705 = vpack.c.bf16 %v669, %v661
    %v706 = vpack.c.bf16 %v670, %v662
    %v707 = vpack.c.bf16 %v671, %v663
    %v708 = vpack.c.bf16 %v672, %v664
    %710 = vset.pattern.permute.xlu0 0
    %711 = vperm.xlu0 %710, %v236
    %v712 = vpop.permute.xlu0 %711
    %715 = vset.pattern.permute.xlu0 0
    %716 = vperm.xlu0 %715, %v237
    %v717 = vpop.permute.xlu0 %716
    %720 = vset.pattern.permute.xlu0 0
    %721 = vperm.xlu0 %720, %v238
    %v722 = vpop.permute.xlu0 %721
    %725 = vset.pattern.permute.xlu0 0
    %726 = vperm.xlu0 %725, %v239
    %v727 = vpop.permute.xlu0 %726
    %v733 = vunpack.c.l.b16 %v673
    %v734 = vunpack.c.l.b16 %v674
    %v735 = vunpack.c.l.b16 %v675
    %v736 = vunpack.c.l.b16 %v676
    %v737 = vpack.c.b16 %v734, %v733
    %v738 = vpack.c.b16 %v736, %v735
    %vm739 = vcmask 523264
    %v741 = vsel %vm739, %v737, 0
    %v744 = vsel %vm739, %v738, 0
    %746 = vmatprep.subr.bf16.mxu0 0
    %747 = vmatpush1.bf16.msra.mxu0 0
    %748 = vmatprep.subr.bf16.mxu0 0
    %749 = vmatpush1.bf16.msra.mxu0 0
    %750 = vmatprep.subr.bf16.mxu0 0
    %751 = vmatpush1.bf16.msra.mxu0 0
    %752 = vmatprep.subr.bf16.mxu0 0
    %753 = vmatpush1.bf16.msra.mxu0 0
    %754 = vmatprep.subr.bf16.mxu0 %v702
    %755 = vmatpush1.bf16.msra.mxu0 %v701
    %756 = vmatprep.subr.bf16.mxu0 %v694
    %757 = vmatpush1.bf16.msra.mxu0 %v693
    %758 = vmatprep.subr.bf16.mxu0 %v686
    %759 = vmatpush1.bf16.msra.mxu0 %v685
    %760 = vmatprep.subr.bf16.mxu0 %v678
    %761 = vmatpush1.bf16.msra.mxu0 %v677
    %762 = vmatprep.subr.bf16.mxu0 0
    %763 = vmatpush2.bf16.msra.mxu0 0
    %764 = vmatprep.subr.bf16.mxu0 0
    %765 = vmatpush2.bf16.msra.mxu0 0
    %766 = vmatprep.subr.bf16.mxu0 0
    %767 = vmatpush2.bf16.msra.mxu0 0
    %768 = vmatprep.subr.bf16.mxu0 0
    %769 = vmatpush2.bf16.msra.mxu0 0
    %770 = vmatprep.subr.bf16.mxu0 0
    %771 = vmatpush2.bf16.msra.mxu0 0
    %772 = vmatprep.subr.bf16.mxu0 0
    %773 = vmatpush2.bf16.msra.mxu0 0
    %774 = vmatprep.subr.bf16.mxu0 0
    %775 = vmatpush2.bf16.msra.mxu0 0
    %776 = vmatprep.subr.bf16.mxu0 0
    %777 = vmatpush2.bf16.msra.mxu0 0
    %778 = vmatprep.mubr.bf16.mxu0 0
    %779 = vmatmul.mubr.bf16.gmra.mxu0 %v741
    %v780 = vpop.f32.mrf.mxu0
    %v781 = vadd.f32 %v712, %v780
    %v782 = vpop.f32.mrf.mxu0
    %v783 = vadd.f32 %v712, %v782
    %v784 = vpop.f32.mrf.mxu0
    %v785 = vadd.f32 %v717, %v784
    %v786 = vpop.f32.mrf.mxu0
    %v787 = vadd.f32 %v717, %v786
    %788 = vmatprep.mubr.bf16.mxu0 0
    %789 = vmatmul.mubr.bf16.gmra.mxu0 %v744
    %v790 = vpop.f32.mrf.mxu0
    %v791 = vadd.f32 %v722, %v790
    %v792 = vpop.f32.mrf.mxu0
    %v793 = vadd.f32 %v722, %v792
    %v794 = vpop.f32.mrf.mxu0
    %v795 = vadd.f32 %v727, %v794
    %v796 = vpop.f32.mrf.mxu0
    %v797 = vadd.f32 %v727, %v796
    %798 = vdwg.mxu0
    %799 = vmatprep.subr.bf16.mxu0 0
    %800 = vmatpush1.bf16.msra.mxu0 0
    %801 = vmatprep.subr.bf16.mxu0 0
    %802 = vmatpush1.bf16.msra.mxu0 0
    %803 = vmatprep.subr.bf16.mxu0 0
    %804 = vmatpush1.bf16.msra.mxu0 0
    %805 = vmatprep.subr.bf16.mxu0 0
    %806 = vmatpush1.bf16.msra.mxu0 0
    %807 = vmatprep.subr.bf16.mxu0 %v704
    %808 = vmatpush1.bf16.msra.mxu0 %v703
    %809 = vmatprep.subr.bf16.mxu0 %v696
    %810 = vmatpush1.bf16.msra.mxu0 %v695
    %811 = vmatprep.subr.bf16.mxu0 %v688
    %812 = vmatpush1.bf16.msra.mxu0 %v687
    %813 = vmatprep.subr.bf16.mxu0 %v680
    %814 = vmatpush1.bf16.msra.mxu0 %v679
    %815 = vmatprep.subr.bf16.mxu0 0
    %816 = vmatpush2.bf16.msra.mxu0 0
    %817 = vmatprep.subr.bf16.mxu0 0
    %818 = vmatpush2.bf16.msra.mxu0 0
    %819 = vmatprep.subr.bf16.mxu0 0
    %820 = vmatpush2.bf16.msra.mxu0 0
    %821 = vmatprep.subr.bf16.mxu0 0
    %822 = vmatpush2.bf16.msra.mxu0 0
    %823 = vmatprep.subr.bf16.mxu0 0
    %824 = vmatpush2.bf16.msra.mxu0 0
    %825 = vmatprep.subr.bf16.mxu0 0
    %826 = vmatpush2.bf16.msra.mxu0 0
    %827 = vmatprep.subr.bf16.mxu0 0
    %828 = vmatpush2.bf16.msra.mxu0 0
    %829 = vmatprep.subr.bf16.mxu0 0
    %830 = vmatpush2.bf16.msra.mxu0 0
    %831 = vmatprep.mubr.bf16.mxu0 0
    %832 = vmatmul.mubr.bf16.gmra.mxu0 %v741
    %v833 = vpop.f32.mrf.mxu0
    %v834 = vadd.f32 %v712, %v833
    %v835 = vpop.f32.mrf.mxu0
    %v836 = vadd.f32 %v712, %v835
    %v837 = vpop.f32.mrf.mxu0
    %v838 = vadd.f32 %v717, %v837
    %v839 = vpop.f32.mrf.mxu0
    %v840 = vadd.f32 %v717, %v839
    %841 = vmatprep.mubr.bf16.mxu0 0
    %842 = vmatmul.mubr.bf16.gmra.mxu0 %v744
    %v843 = vpop.f32.mrf.mxu0
    %v844 = vadd.f32 %v722, %v843
    %v845 = vpop.f32.mrf.mxu0
    %v846 = vadd.f32 %v722, %v845
    %v847 = vpop.f32.mrf.mxu0
    %v848 = vadd.f32 %v727, %v847
    %v849 = vpop.f32.mrf.mxu0
    %v850 = vadd.f32 %v727, %v849
    %851 = vdwg.mxu0
    %852 = vmatprep.subr.bf16.mxu0 0
    %853 = vmatpush1.bf16.msra.mxu0 0
    %854 = vmatprep.subr.bf16.mxu0 0
    %855 = vmatpush1.bf16.msra.mxu0 0
    %856 = vmatprep.subr.bf16.mxu0 0
    %857 = vmatpush1.bf16.msra.mxu0 0
    %858 = vmatprep.subr.bf16.mxu0 0
    %859 = vmatpush1.bf16.msra.mxu0 0
    %860 = vmatprep.subr.bf16.mxu0 %v706
    %861 = vmatpush1.bf16.msra.mxu0 %v705
    %862 = vmatprep.subr.bf16.mxu0 %v698
    %863 = vmatpush1.bf16.msra.mxu0 %v697
    %864 = vmatprep.subr.bf16.mxu0 %v690
    %865 = vmatpush1.bf16.msra.mxu0 %v689
    %866 = vmatprep.subr.bf16.mxu0 %v682
    %867 = vmatpush1.bf16.msra.mxu0 %v681
    %868 = vmatprep.subr.bf16.mxu0 0
    %869 = vmatpush2.bf16.msra.mxu0 0
    %870 = vmatprep.subr.bf16.mxu0 0
    %871 = vmatpush2.bf16.msra.mxu0 0
    %872 = vmatprep.subr.bf16.mxu0 0
    %873 = vmatpush2.bf16.msra.mxu0 0
    %874 = vmatprep.subr.bf16.mxu0 0
    %875 = vmatpush2.bf16.msra.mxu0 0
    %876 = vmatprep.subr.bf16.mxu0 0
    %877 = vmatpush2.bf16.msra.mxu0 0
    %878 = vmatprep.subr.bf16.mxu0 0
    %879 = vmatpush2.bf16.msra.mxu0 0
    %880 = vmatprep.subr.bf16.mxu0 0
    %881 = vmatpush2.bf16.msra.mxu0 0
    %882 = vmatprep.subr.bf16.mxu0 0
    %883 = vmatpush2.bf16.msra.mxu0 0
    %884 = vmatprep.mubr.bf16.mxu0 0
    %885 = vmatmul.mubr.bf16.gmra.mxu0 %v741
    %v886 = vpop.f32.mrf.mxu0
    %v887 = vadd.f32 %v712, %v886
    %v888 = vpop.f32.mrf.mxu0
    %v889 = vadd.f32 %v712, %v888
    %v890 = vpop.f32.mrf.mxu0
    %v891 = vadd.f32 %v717, %v890
    %v892 = vpop.f32.mrf.mxu0
    %v893 = vadd.f32 %v717, %v892
    %894 = vmatprep.mubr.bf16.mxu0 0
    %895 = vmatmul.mubr.bf16.gmra.mxu0 %v744
    %v896 = vpop.f32.mrf.mxu0
    %v897 = vadd.f32 %v722, %v896
    %v898 = vpop.f32.mrf.mxu0
    %v899 = vadd.f32 %v722, %v898
    %v900 = vpop.f32.mrf.mxu0
    %v901 = vadd.f32 %v727, %v900
    %v902 = vpop.f32.mrf.mxu0
    %v903 = vadd.f32 %v727, %v902
    %904 = vdwg.mxu0
    %905 = vmatprep.subr.bf16.mxu0 0
    %906 = vmatpush1.bf16.msra.mxu0 0
    %907 = vmatprep.subr.bf16.mxu0 0
    %908 = vmatpush1.bf16.msra.mxu0 0
    %909 = vmatprep.subr.bf16.mxu0 0
    %910 = vmatpush1.bf16.msra.mxu0 0
    %911 = vmatprep.subr.bf16.mxu0 0
    %912 = vmatpush1.bf16.msra.mxu0 0
    %913 = vmatprep.subr.bf16.mxu0 %v708
    %914 = vmatpush1.bf16.msra.mxu0 %v707
    %915 = vmatprep.subr.bf16.mxu0 %v700
    %916 = vmatpush1.bf16.msra.mxu0 %v699
    %917 = vmatprep.subr.bf16.mxu0 %v692
    %918 = vmatpush1.bf16.msra.mxu0 %v691
    %919 = vmatprep.subr.bf16.mxu0 %v684
    %920 = vmatpush1.bf16.msra.mxu0 %v683
    %921 = vmatprep.subr.bf16.mxu0 0
    %922 = vmatpush2.bf16.msra.mxu0 0
    %923 = vmatprep.subr.bf16.mxu0 0
    %924 = vmatpush2.bf16.msra.mxu0 0
    %925 = vmatprep.subr.bf16.mxu0 0
    %926 = vmatpush2.bf16.msra.mxu0 0
    %927 = vmatprep.subr.bf16.mxu0 0
    %928 = vmatpush2.bf16.msra.mxu0 0
    %929 = vmatprep.subr.bf16.mxu0 0
    %930 = vmatpush2.bf16.msra.mxu0 0
    %931 = vmatprep.subr.bf16.mxu0 0
    %932 = vmatpush2.bf16.msra.mxu0 0
    %933 = vmatprep.subr.bf16.mxu0 0
    %934 = vmatpush2.bf16.msra.mxu0 0
    %935 = vmatprep.subr.bf16.mxu0 0
    %936 = vmatpush2.bf16.msra.mxu0 0
    %937 = vmatprep.mubr.bf16.mxu0 0
    %938 = vmatmul.mubr.bf16.gmra.mxu0 %v741
    %v939 = vpop.f32.mrf.mxu0
    %v940 = vadd.f32 %v712, %v939
    %v941 = vpop.f32.mrf.mxu0
    %v942 = vadd.f32 %v712, %v941
    %v943 = vpop.f32.mrf.mxu0
    %v944 = vadd.f32 %v717, %v943
    %v945 = vpop.f32.mrf.mxu0
    %v946 = vadd.f32 %v717, %v945
    %947 = vmatprep.mubr.bf16.mxu0 0
    %948 = vmatmul.mubr.bf16.gmra.mxu0 %v744
    %v949 = vpop.f32.mrf.mxu0
    %v950 = vadd.f32 %v722, %v949
    %v951 = vpop.f32.mrf.mxu0
    %v952 = vadd.f32 %v722, %v951
    %v953 = vpop.f32.mrf.mxu0
    %v954 = vadd.f32 %v727, %v953
    %v955 = vpop.f32.mrf.mxu0
    %v956 = vadd.f32 %v727, %v955
    %957 = vdwg.mxu0
    %v958 = vmax.f32 %v781, 0.0
    %v959 = vmax.f32 %v783, 0.0
    %v960 = vmax.f32 %v834, 0.0
    %v961 = vmax.f32 %v836, 0.0
    %v962 = vmax.f32 %v887, 0.0
    %v963 = vmax.f32 %v889, 0.0
    %v964 = vmax.f32 %v940, 0.0
    %v965 = vmax.f32 %v942, 0.0
    %v966 = vmax.f32 %v785, 0.0
    %v967 = vmax.f32 %v787, 0.0
    %v968 = vmax.f32 %v838, 0.0
    %v969 = vmax.f32 %v840, 0.0
    %v970 = vmax.f32 %v891, 0.0
    %v971 = vmax.f32 %v893, 0.0
    %v972 = vmax.f32 %v944, 0.0
    %v973 = vmax.f32 %v946, 0.0
    %v974 = vmax.f32 %v791, 0.0
    %v975 = vmax.f32 %v793, 0.0
    %v976 = vmax.f32 %v844, 0.0
    %v977 = vmax.f32 %v846, 0.0
    %v978 = vmax.f32 %v897, 0.0
    %v979 = vmax.f32 %v899, 0.0
    %v980 = vmax.f32 %v950, 0.0
    %v981 = vmax.f32 %v952, 0.0
    %v982 = vmax.f32 %v795, 0.0
    %v983 = vmax.f32 %v797, 0.0
    %v984 = vmax.f32 %v848, 0.0
    %v985 = vmax.f32 %v850, 0.0
    %v986 = vmax.f32 %v901, 0.0
    %v987 = vmax.f32 %v903, 0.0
    %v988 = vmax.f32 %v954, 0.0
    %v989 = vmax.f32 %v956, 0.0
    %v990 = vld [vmem:[%s3] sm:$0xf]
    %v991 = vld [vmem:[%s3 + $0x4] sm:$0xf]
    %v992 = vpack.c.bf16 %v966, %v958
    %v993 = vpack.c.bf16 %v967, %v959
    %v994 = vpack.c.bf16 %v968, %v960
    %v995 = vpack.c.bf16 %v969, %v961
    %v996 = vpack.c.bf16 %v970, %v962
    %v997 = vpack.c.bf16 %v971, %v963
    %v998 = vpack.c.bf16 %v972, %v964
    %v999 = vpack.c.bf16 %v973, %v965
    %v1000 = vpack.c.bf16 %v982, %v974
    %v1001 = vpack.c.bf16 %v983, %v975
    %v1002 = vpack.c.bf16 %v984, %v976
    %v1003 = vpack.c.bf16 %v985, %v977
    %v1004 = vpack.c.bf16 %v986, %v978
    %v1005 = vpack.c.bf16 %v987, %v979
    %v1006 = vpack.c.bf16 %v988, %v980
    %v1007 = vpack.c.bf16 %v989, %v981
    %1009 = vset.pattern.permute.xlu0 0
    %1010 = vperm.xlu0 %1009, %v240
    %v1011 = vpop.permute.xlu0 %1010
    %1014 = vset.pattern.permute.xlu0 0
    %1015 = vperm.xlu0 %1014, %v241
    %v1016 = vpop.permute.xlu0 %1015
    %v1020 = vunpack.c.l.b16 %v990
    %v1021 = vunpack.c.l.b16 %v991
    %v1022 = vpack.c.b16 %v1021, %v1020
    %vm1023 = vcmask 261120
    %v1025 = vsel %vm1023, %v1022, 0
    %1027 = vmatprep.subr.bf16.mxu0 0
    %1028 = vmatpush1.bf16.msra.mxu0 0
    %1029 = vmatprep.subr.bf16.mxu0 0
    %1030 = vmatpush1.bf16.msra.mxu0 0
    %1031 = vmatprep.subr.bf16.mxu0 0
    %1032 = vmatpush1.bf16.msra.mxu0 0
    %1033 = vmatprep.subr.bf16.mxu0 0
    %1034 = vmatpush1.bf16.msra.mxu0 0
    %1035 = vmatprep.subr.bf16.mxu0 0
    %1036 = vmatpush1.bf16.msra.mxu0 0
    %1037 = vmatprep.subr.bf16.mxu0 0
    %1038 = vmatpush1.bf16.msra.mxu0 0
    %1039 = vmatprep.subr.bf16.mxu0 %v1001
    %1040 = vmatpush1.bf16.msra.mxu0 %v1000
    %1041 = vmatprep.subr.bf16.mxu0 %v993
    %1042 = vmatpush1.bf16.msra.mxu0 %v992
    %1043 = vmatprep.subr.bf16.mxu0 0
    %1044 = vmatpush2.bf16.msra.mxu0 0
    %1045 = vmatprep.subr.bf16.mxu0 0
    %1046 = vmatpush2.bf16.msra.mxu0 0
    %1047 = vmatprep.subr.bf16.mxu0 0
    %1048 = vmatpush2.bf16.msra.mxu0 0
    %1049 = vmatprep.subr.bf16.mxu0 0
    %1050 = vmatpush2.bf16.msra.mxu0 0
    %1051 = vmatprep.subr.bf16.mxu0 0
    %1052 = vmatpush2.bf16.msra.mxu0 0
    %1053 = vmatprep.subr.bf16.mxu0 0
    %1054 = vmatpush2.bf16.msra.mxu0 0
    %1055 = vmatprep.subr.bf16.mxu0 0
    %1056 = vmatpush2.bf16.msra.mxu0 0
    %1057 = vmatprep.subr.bf16.mxu0 0
    %1058 = vmatpush2.bf16.msra.mxu0 0
    %1059 = vmatprep.mubr.bf16.mxu0 0
    %1060 = vmatmul.mubr.bf16.gmra.mxu0 %v1025
    %v1061 = vpop.f32.mrf.mxu0
    %v1062 = vadd.f32 %v1011, %v1061
    %v1063 = vpop.f32.mrf.mxu0
    %v1064 = vadd.f32 %v1011, %v1063
    %v1065 = vpop.f32.mrf.mxu0
    %v1066 = vadd.f32 %v1016, %v1065
    %v1067 = vpop.f32.mrf.mxu0
    %v1068 = vadd.f32 %v1016, %v1067
    %1069 = vdwg.mxu0
    %1070 = vmatprep.subr.bf16.mxu0 0
    %1071 = vmatpush1.bf16.msra.mxu0 0
    %1072 = vmatprep.subr.bf16.mxu0 0
    %1073 = vmatpush1.bf16.msra.mxu0 0
    %1074 = vmatprep.subr.bf16.mxu0 0
    %1075 = vmatpush1.bf16.msra.mxu0 0
    %1076 = vmatprep.subr.bf16.mxu0 0
    %1077 = vmatpush1.bf16.msra.mxu0 0
    %1078 = vmatprep.subr.bf16.mxu0 0
    %1079 = vmatpush1.bf16.msra.mxu0 0
    %1080 = vmatprep.subr.bf16.mxu0 0
    %1081 = vmatpush1.bf16.msra.mxu0 0
    %1082 = vmatprep.subr.bf16.mxu0 %v1003
    %1083 = vmatpush1.bf16.msra.mxu0 %v1002
    %1084 = vmatprep.subr.bf16.mxu0 %v995
    %1085 = vmatpush1.bf16.msra.mxu0 %v994
    %1086 = vmatprep.subr.bf16.mxu0 0
    %1087 = vmatpush2.bf16.msra.mxu0 0
    %1088 = vmatprep.subr.bf16.mxu0 0
    %1089 = vmatpush2.bf16.msra.mxu0 0
    %1090 = vmatprep.subr.bf16.mxu0 0
    %1091 = vmatpush2.bf16.msra.mxu0 0
    %1092 = vmatprep.subr.bf16.mxu0 0
    %1093 = vmatpush2.bf16.msra.mxu0 0
    %1094 = vmatprep.subr.bf16.mxu0 0
    %1095 = vmatpush2.bf16.msra.mxu0 0
    %1096 = vmatprep.subr.bf16.mxu0 0
    %1097 = vmatpush2.bf16.msra.mxu0 0
    %1098 = vmatprep.subr.bf16.mxu0 0
    %1099 = vmatpush2.bf16.msra.mxu0 0
    %1100 = vmatprep.subr.bf16.mxu0 0
    %1101 = vmatpush2.bf16.msra.mxu0 0
    %1102 = vmatprep.mubr.bf16.mxu0 0
    %1103 = vmatmul.mubr.bf16.gmra.mxu0 %v1025
    %v1104 = vpop.f32.mrf.mxu0
    %v1105 = vadd.f32 %v1011, %v1104
    %v1106 = vpop.f32.mrf.mxu0
    %v1107 = vadd.f32 %v1011, %v1106
    %v1108 = vpop.f32.mrf.mxu0
    %v1109 = vadd.f32 %v1016, %v1108
    %v1110 = vpop.f32.mrf.mxu0
    %v1111 = vadd.f32 %v1016, %v1110
    %1112 = vdwg.mxu0
    %1113 = vmatprep.subr.bf16.mxu0 0
    %1114 = vmatpush1.bf16.msra.mxu0 0
    %1115 = vmatprep.subr.bf16.mxu0 0
    %1116 = vmatpush1.bf16.msra.mxu0 0
    %1117 = vmatprep.subr.bf16.mxu0 0
    %1118 = vmatpush1.bf16.msra.mxu0 0
    %1119 = vmatprep.subr.bf16.mxu0 0
    %1120 = vmatpush1.bf16.msra.mxu0 0
    %1121 = vmatprep.subr.bf16.mxu0 0
    %1122 = vmatpush1.bf16.msra.mxu0 0
    %1123 = vmatprep.subr.bf16.mxu0 0
    %1124 = vmatpush1.bf16.msra.mxu0 0
    %1125 = vmatprep.subr.bf16.mxu0 %v1005
    %1126 = vmatpush1.bf16.msra.mxu0 %v1004
    %1127 = vmatprep.subr.bf16.mxu0 %v997
    %1128 = vmatpush1.bf16.msra.mxu0 %v996
    %1129 = vmatprep.subr.bf16.mxu0 0
    %1130 = vmatpush2.bf16.msra.mxu0 0
    %1131 = vmatprep.subr.bf16.mxu0 0
    %1132 = vmatpush2.bf16.msra.mxu0 0
    %1133 = vmatprep.subr.bf16.mxu0 0
    %1134 = vmatpush2.bf16.msra.mxu0 0
    %1135 = vmatprep.subr.bf16.mxu0 0
    %1136 = vmatpush2.bf16.msra.mxu0 0
    %1137 = vmatprep.subr.bf16.mxu0 0
    %1138 = vmatpush2.bf16.msra.mxu0 0
    %1139 = vmatprep.subr.bf16.mxu0 0
    %1140 = vmatpush2.bf16.msra.mxu0 0
    %1141 = vmatprep.subr.bf16.mxu0 0
    %1142 = vmatpush2.bf16.msra.mxu0 0
    %1143 = vmatprep.subr.bf16.mxu0 0
    %1144 = vmatpush2.bf16.msra.mxu0 0
    %1145 = vmatprep.mubr.bf16.mxu0 0
    %1146 = vmatmul.mubr.bf16.gmra.mxu0 %v1025
    %v1147 = vpop.f32.mrf.mxu0
    %v1148 = vadd.f32 %v1011, %v1147
    %v1149 = vpop.f32.mrf.mxu0
    %v1150 = vadd.f32 %v1011, %v1149
    %v1151 = vpop.f32.mrf.mxu0
    %v1152 = vadd.f32 %v1016, %v1151
    %v1153 = vpop.f32.mrf.mxu0
    %v1154 = vadd.f32 %v1016, %v1153
    %1155 = vdwg.mxu0
    %1156 = vmatprep.subr.bf16.mxu0 0
    %1157 = vmatpush1.bf16.msra.mxu0 0
    %1158 = vmatprep.subr.bf16.mxu0 0
    %1159 = vmatpush1.bf16.msra.mxu0 0
    %1160 = vmatprep.subr.bf16.mxu0 0
    %1161 = vmatpush1.bf16.msra.mxu0 0
    %1162 = vmatprep.subr.bf16.mxu0 0
    %1163 = vmatpush1.bf16.msra.mxu0 0
    %1164 = vmatprep.subr.bf16.mxu0 0
    %1165 = vmatpush1.bf16.msra.mxu0 0
    %1166 = vmatprep.subr.bf16.mxu0 0
    %1167 = vmatpush1.bf16.msra.mxu0 0
    %1168 = vmatprep.subr.bf16.mxu0 %v1007
    %1169 = vmatpush1.bf16.msra.mxu0 %v1006
    %1170 = vmatprep.subr.bf16.mxu0 %v999
    %1171 = vmatpush1.bf16.msra.mxu0 %v998
    %1172 = vmatprep.subr.bf16.mxu0 0
    %1173 = vmatpush2.bf16.msra.mxu0 0
    %1174 = vmatprep.subr.bf16.mxu0 0
    %1175 = vmatpush2.bf16.msra.mxu0 0
    %1176 = vmatprep.subr.bf16.mxu0 0
    %1177 = vmatpush2.bf16.msra.mxu0 0
    %1178 = vmatprep.subr.bf16.mxu0 0
    %1179 = vmatpush2.bf16.msra.mxu0 0
    %1180 = vmatprep.subr.bf16.mxu0 0
    %1181 = vmatpush2.bf16.msra.mxu0 0
    %1182 = vmatprep.subr.bf16.mxu0 0
    %1183 = vmatpush2.bf16.msra.mxu0 0
    %1184 = vmatprep.subr.bf16.mxu0 0
    %1185 = vmatpush2.bf16.msra.mxu0 0
    %1186 = vmatprep.subr.bf16.mxu0 0
    %1187 = vmatpush2.bf16.msra.mxu0 0
    %1188 = vmatprep.mubr.bf16.mxu0 0
    %1189 = vmatmul.mubr.bf16.gmra.mxu0 %v1025
    %v1190 = vpop.f32.mrf.mxu0
    %v1191 = vadd.f32 %v1011, %v1190
    %v1192 = vpop.f32.mrf.mxu0
    %v1193 = vadd.f32 %v1011, %v1192
    %v1194 = vpop.f32.mrf.mxu0
    %v1195 = vadd.f32 %v1016, %v1194
    %v1196 = vpop.f32.mrf.mxu0
    %v1197 = vadd.f32 %v1016, %v1196
    %1198 = vdwg.mxu0
    %v1199 = vmax.f32 %v1062, 0.0
    %v1200 = vmax.f32 %v1064, 0.0
    %v1201 = vmax.f32 %v1105, 0.0
    %v1202 = vmax.f32 %v1107, 0.0
    %v1203 = vmax.f32 %v1148, 0.0
    %v1204 = vmax.f32 %v1150, 0.0
    %v1205 = vmax.f32 %v1191, 0.0
    %v1206 = vmax.f32 %v1193, 0.0
    %v1207 = vmax.f32 %v1066, 0.0
    %v1208 = vmax.f32 %v1068, 0.0
    %v1209 = vmax.f32 %v1109, 0.0
    %v1210 = vmax.f32 %v1111, 0.0
    %v1211 = vmax.f32 %v1152, 0.0
    %v1212 = vmax.f32 %v1154, 0.0
    %v1213 = vmax.f32 %v1195, 0.0
    %v1214 = vmax.f32 %v1197, 0.0
    %1216 = vset.pattern.permute.xlu0 0
    %1217 = vperm.xlu0 %1216, %v242
    %v1218 = vpop.permute.xlu0 %1217
    %1221 = vset.pattern.permute.xlu0 0
    %1222 = vperm.xlu0 %1221, %v243
    %v1223 = vpop.permute.xlu0 %1222
    %v1225 = vmul.f32 %v1199, %v1218
    %v1226 = vmul.f32 %v1200, %v1218
    %v1227 = vmul.f32 %v1201, %v1218
    %v1228 = vmul.f32 %v1202, %v1218
    %v1229 = vmul.f32 %v1203, %v1218
    %v1230 = vmul.f32 %v1204, %v1218
    %v1231 = vmul.f32 %v1205, %v1218
    %v1232 = vmul.f32 %v1206, %v1218
    %v1233 = vmul.f32 %v1207, %v1223
    %v1234 = vmul.f32 %v1208, %v1223
    %v1235 = vmul.f32 %v1209, %v1223
    %v1236 = vmul.f32 %v1210, %v1223
    %v1237 = vmul.f32 %v1211, %v1223
    %v1238 = vmul.f32 %v1212, %v1223
    %v1239 = vmul.f32 %v1213, %v1223
    %v1240 = vmul.f32 %v1214, %v1223
    %v1241 = vadd.f32 %v1225, %v1233
    %v1242 = vrot.slane %v1241, 4
    %v1243 = vadd.f32 %v1241, %v1242
    %v1244 = vrot.slane %v1243, 2
    %v1245 = vadd.f32 %v1243, %v1244
    %v1246 = vrot.slane %v1245, 1
    %v1247 = vadd.f32 %v1245, %v1246
    %v1248 = vadd.f32 %v1226, %v1234
    %v1249 = vrot.slane %v1248, 4
    %v1250 = vadd.f32 %v1248, %v1249
    %v1251 = vrot.slane %v1250, 2
    %v1252 = vadd.f32 %v1250, %v1251
    %v1253 = vrot.slane %v1252, 1
    %v1254 = vadd.f32 %v1252, %v1253
    %v1255 = vadd.f32 %v1227, %v1235
    %v1256 = vrot.slane %v1255, 4
    %v1257 = vadd.f32 %v1255, %v1256
    %v1258 = vrot.slane %v1257, 2
    %v1259 = vadd.f32 %v1257, %v1258
    %v1260 = vrot.slane %v1259, 1
    %v1261 = vadd.f32 %v1259, %v1260
    %v1262 = vadd.f32 %v1228, %v1236
    %v1263 = vrot.slane %v1262, 4
    %v1264 = vadd.f32 %v1262, %v1263
    %v1265 = vrot.slane %v1264, 2
    %v1266 = vadd.f32 %v1264, %v1265
    %v1267 = vrot.slane %v1266, 1
    %v1268 = vadd.f32 %v1266, %v1267
    %v1269 = vadd.f32 %v1229, %v1237
    %v1270 = vrot.slane %v1269, 4
    %v1271 = vadd.f32 %v1269, %v1270
    %v1272 = vrot.slane %v1271, 2
    %v1273 = vadd.f32 %v1271, %v1272
    %v1274 = vrot.slane %v1273, 1
    %v1275 = vadd.f32 %v1273, %v1274
    %v1276 = vadd.f32 %v1230, %v1238
    %v1277 = vrot.slane %v1276, 4
    %v1278 = vadd.f32 %v1276, %v1277
    %v1279 = vrot.slane %v1278, 2
    %v1280 = vadd.f32 %v1278, %v1279
    %v1281 = vrot.slane %v1280, 1
    %v1282 = vadd.f32 %v1280, %v1281
    %v1283 = vadd.f32 %v1231, %v1239
    %v1284 = vrot.slane %v1283, 4
    %v1285 = vadd.f32 %v1283, %v1284
    %v1286 = vrot.slane %v1285, 2
    %v1287 = vadd.f32 %v1285, %v1286
    %v1288 = vrot.slane %v1287, 1
    %v1289 = vadd.f32 %v1287, %v1288
    %v1290 = vadd.f32 %v1232, %v1240
    %v1291 = vrot.slane %v1290, 4
    %v1292 = vadd.f32 %v1290, %v1291
    %v1293 = vrot.slane %v1292, 2
    %v1294 = vadd.f32 %v1292, %v1293
    %v1295 = vrot.slane %v1294, 1
    %v1296 = vadd.f32 %v1294, %v1295
    %1298 = vset.pattern.permute.xlu0 0
    %1299 = vperm.xlu0 %1298, %v244
    %v1300 = vpop.permute.xlu0 %1299
    %v1302 = vadd.f32 %v1247, %v1300
    %v1303 = vadd.f32 %v1254, %v1300
    %v1304 = vadd.f32 %v1261, %v1300
    %v1305 = vadd.f32 %v1268, %v1300
    %v1306 = vadd.f32 %v1275, %v1300
    %v1307 = vadd.f32 %v1282, %v1300
    %v1308 = vadd.f32 %v1289, %v1300
    %v1309 = vadd.f32 %v1296, %v1300
    %v1318 = vcombine.low %v1302, %v1303
    %v1319 = vcombine.low %v1304, %v1305
    %v1320 = vcombine.low %v1306, %v1307
    %v1321 = vcombine.low %v1308, %v1309
    %v1323 = vunpack.c.l.s4 1966171168
    %v1324 = vunpack.c.0.s8 %v1323
    %v1325 = vlaneseq
    %v1326 = vshrl.u32 %v1325, 7
    %v1327 = vsub.s32 %v1324, %v1326
    %v1328 = vrot.slane %v1318, %v1327
    %v1330 = vunpack.c.l.s4 1966171168
    %v1331 = vunpack.c.0.s8 %v1330
    %v1332 = vlaneseq
    %v1333 = vshrl.u32 %v1332, 7
    %v1334 = vsub.s32 %v1331, %v1333
    %v1335 = vrot.slane %v1319, %v1334
    %v1337 = vunpack.c.l.s4 1966171168
    %v1338 = vunpack.c.0.s8 %v1337
    %v1339 = vlaneseq
    %v1340 = vshrl.u32 %v1339, 7
    %v1341 = vsub.s32 %v1338, %v1340
    %v1342 = vrot.slane %v1320, %v1341
    %v1344 = vunpack.c.l.s4 1966171168
    %v1345 = vunpack.c.0.s8 %v1344
    %v1346 = vlaneseq
    %v1347 = vshrl.u32 %v1346, 7
    %v1348 = vsub.s32 %v1345, %v1347
    %v1349 = vrot.slane %v1321, %v1348
    %v1350 = vcombine.low %v1328, %v1335
    %v1351 = vcombine.low %v1342, %v1349
    %v1353 = vunpack.c.l.s4 1966171168
    %v1354 = vunpack.c.0.s8 %v1353
    %v1355 = vlaneseq
    %v1356 = vshrl.u32 %v1355, 7
    %v1357 = vsub.s32 %v1354, %v1356
    %v1358 = vrot.slane %v1350, %v1357
    %v1360 = vunpack.c.l.s4 1966171168
    %v1361 = vunpack.c.0.s8 %v1360
    %v1362 = vlaneseq
    %v1363 = vshrl.u32 %v1362, 7
    %v1364 = vsub.s32 %v1361, %v1363
    %v1365 = vrot.slane %v1351, %v1364
    %v1366 = vcombine.low %v1358, %v1365
    %1368 = vst [vmem:[#allocation5] sm:$0xff] %v1366
    // Predicated region
    $region26: #{_mlp_forward_impl.1} parent=1 // pred_check
      _
    $region27: #{_mlp_forward_impl.1} parent=1 // pred_check_branch
      %1370 = sbr.rel (0) target = $region29
    $region28: #{_mlp_forward_impl.1} parent=1 // pred_region
      %s1372 = ssub.s32 128, 128
      %1373 = vsyncadd [#allocation4], %s1372
      %s1375 = sshll.u32 [#allocation5], 4
      %s1376 = int_to_ptr.vmem [resolvable:$true] %s1375
      %1378 = dma.vmem_to_hbm [thread:$0]  %s1376, 128, %s5, [#allocation4]
    $region29: #{_mlp_forward_impl.1} parent=1 // pred_fallthru
      _
    // Predicated region
    $region30: #{_mlp_forward_impl.1} parent=1 // pred_check
      _
    $region31: #{_mlp_forward_impl.1} parent=1 // pred_check_branch
      %1380 = sbr.rel (0) target = $region33
    $region32: #{_mlp_forward_impl.1} parent=1 // pred_region
      %1381 = dma.done [#allocation4], 128
    $region33: #{_mlp_forward_impl.1} parent=1 // pred_fallthru
      _
    %1382 = vsyncpa [#allocation3], 1
    %1383 = vsyncpa [#allocation4], 1

</llo_original>
